<compile_context>
chip_gen: v5e
topology: v5e:2x2
jax: 0.10.0
libtpu: 0.0.40
codegen_flags: <defaults>
</compile_context>

<pallas_src>
import functools
import math

import jax
import jax.numpy as jnp
from jax import lax
from jax.experimental import pallas as pl
from jax.experimental.pallas import tpu as pltpu

LN_EPS = 1e-12                       # Mockingjay TransformerLayerNorm eps
VMEM_LIMIT = 32 * 1024 * 1024        # safe scoped-VMEM budget on v5e/v6e/v7x


# ----------------------------------------------------------------------------
# helpers
# ----------------------------------------------------------------------------
def _gelu(x):
    # tanh-approx GELU (one EUP tanh + few VALU ops).  Replaces the erf polynomial
    # per perf review; matches erf-GELU to ~1e-3 abs.
    c = 0.7978845608028654  # sqrt(2/pi)
    return 0.5 * x * (1.0 + jnp.tanh(c * (x + 0.044715 * x * x * x)))


def _pick_tile(dim, cap, align):
    """Largest divisor of `dim` that is <= cap and a multiple of `align`.
    Falls back to the full dim (no tiling) if none exists or dim <= cap."""
    if dim <= cap:
        return dim
    t = (cap // align) * align
    while t >= align:
        if dim % t == 0:
            return t
        t -= align
    return dim


# ----------------------------------------------------------------------------
# Fused tiled linear:  out = [LN][ +residual ][GELU]( x @ w + b )
# ----------------------------------------------------------------------------
def _linear_kernel(*refs, activation, has_residual, has_ln):
    x_ref, w_ref, b_ref = refs[0], refs[1], refs[2]
    i = 3
    res_ref = None
    g_ref = beta_ref = None
    if has_residual:
        res_ref = refs[i]; i += 1
    if has_ln:
        g_ref, beta_ref = refs[i], refs[i + 1]; i += 2
    o_ref = refs[i]
    acc_ref = refs[i + 1]

    k = pl.program_id(2)

    @pl.when(k == 0)
    def _():
        acc_ref[...] = jnp.zeros_like(acc_ref)

    # bf16 x bf16 on the MXU, fp32 accumulation.
    acc_ref[...] += jnp.dot(x_ref[...].astype(jnp.bfloat16), w_ref[...],
                            preferred_element_type=jnp.float32)

    @pl.when(k == pl.num_programs(2) - 1)
    def _():
        y = acc_ref[...] + b_ref[...]
        if activation == "gelu":
            y = _gelu(y)
        if has_residual:
            y = y + res_ref[...]
        if has_ln:
            mean = jnp.mean(y, axis=-1, keepdims=True)
            c = y - mean
            var = jnp.mean(c * c, axis=-1, keepdims=True)
            y = c * lax.rsqrt(var + LN_EPS) * g_ref[...] + beta_ref[...]
        o_ref[...] = y.astype(o_ref.dtype)


def fused_linear(x, w, b, *, activation=None, residual=None, ln=None,
                 tm_cap=256, tn_cap=512, tk_cap=512):
    """x: [M, K] f32, w: [K, N] bf16, b: [N] f32 -> [M, N] f32.
    Optional epilogue: GELU, residual add, LayerNorm (LN requires tn == N)."""
    M, K = x.shape
    K2, N = w.shape
    assert K == K2
    tm = _pick_tile(M, tm_cap, 8)
    tk = _pick_tile(K, tk_cap, 256)
    tn = N if ln is not None else _pick_tile(N, tn_cap, 128)
    grid = (M // tm, N // tn, K // tk)

    in_specs = [
        pl.BlockSpec((tm, tk), lambda i, j, k: (i, k)),
        pl.BlockSpec((tk, tn), lambda i, j, k: (k, j)),
        pl.BlockSpec((1, tn), lambda i, j, k: (0, j)),
    ]
    args = [x, w, b.reshape(1, N)]
    if residual is not None:
        in_specs.append(pl.BlockSpec((tm, tn), lambda i, j, k: (i, j)))
        args.append(residual)
    if ln is not None:
        gamma, beta = ln
        in_specs.append(pl.BlockSpec((1, tn), lambda i, j, k: (0, j)))
        in_specs.append(pl.BlockSpec((1, tn), lambda i, j, k: (0, j)))
        args += [gamma.reshape(1, N), beta.reshape(1, N)]

    kernel = functools.partial(_linear_kernel, activation=activation,
                               has_residual=residual is not None,
                               has_ln=ln is not None)
    return pl.pallas_call(
        kernel,
        out_shape=jax.ShapeDtypeStruct((M, N), jnp.float32),
        grid=grid,
        in_specs=in_specs,
        out_specs=pl.BlockSpec((tm, tn), lambda i, j, k: (i, j)),
        scratch_shapes=[pltpu.VMEM((tm, tn), jnp.float32)],
        compiler_params=pltpu.CompilerParams(
            dimension_semantics=("parallel", "parallel", "arbitrary"),
            vmem_limit_bytes=VMEM_LIMIT),
    )(*args)


# ----------------------------------------------------------------------------
# Multi-head self-attention (all heads per batch-step, lane-dense [T, H] output)
# ----------------------------------------------------------------------------
def _attn_kernel(qkv_ref, bias_ref, o_ref, *, num_heads, hidden, scale):
    H = hidden
    dh = H // num_heads
    qkv = qkv_ref[...]                       # (T, 3H) fp32
    bias = bias_ref[0]                       # (1, T) additive mask (1-mask)*-10000
    q_all = (qkv[:, 0 * H:1 * H] * scale).astype(jnp.bfloat16)
    k_all = qkv[:, 1 * H:2 * H].astype(jnp.bfloat16)
    v_all = qkv[:, 2 * H:3 * H].astype(jnp.bfloat16)

    ctx_heads = []
    for h in range(num_heads):
        sl = slice(h * dh, (h + 1) * dh)
        s = lax.dot_general(q_all[:, sl], k_all[:, sl], (((1,), (1,)), ((), ())),
                            preferred_element_type=jnp.float32) + bias   # (T, T)
        s = s - jnp.max(s, axis=-1, keepdims=True)
        p = jnp.exp(s)
        p = p * pl.reciprocal(jnp.sum(p, axis=-1, keepdims=True), approx=True)
        ctx_heads.append(jnp.dot(p.astype(jnp.bfloat16), v_all[:, sl],
                                 preferred_element_type=jnp.float32))
    o_ref[...] = jnp.concatenate(ctx_heads, axis=-1).astype(o_ref.dtype)


def attention(qkv, bias, num_heads, seq_len):
    """qkv: [NB*T, 3H] f32; bias: [NB, 1, T] f32 -> context [NB*T, H] f32."""
    M, H3 = qkv.shape
    H = H3 // 3
    NB = M // seq_len
    dh = H // num_heads
    scale = 1.0 / math.sqrt(dh)
    return pl.pallas_call(
        functools.partial(_attn_kernel, num_heads=num_heads, hidden=H, scale=scale),
        out_shape=jax.ShapeDtypeStruct((M, H), jnp.float32),
        grid=(NB,),
        in_specs=[pl.BlockSpec((seq_len, H3), lambda b: (b, 0)),
                  pl.BlockSpec((1, 1, seq_len), lambda b: (b, 0, 0))],
        out_specs=pl.BlockSpec((seq_len, H), lambda b: (b, 0)),
        compiler_params=pltpu.CompilerParams(
            dimension_semantics=("parallel",),
            vmem_limit_bytes=VMEM_LIMIT),
    )(qkv, bias)


# ----------------------------------------------------------------------------
# Masked L1 loss (tiled row-block reduction into resident SMEM scalars)
# ----------------------------------------------------------------------------
def _masked_l1_kernel(p_ref, t_ref, m_ref, o_ref):
    @pl.when(pl.program_id(0) == 0)
    def _():
        o_ref[0] = jnp.float32(0.0)
        o_ref[1] = jnp.float32(0.0)
    m = m_ref[...]
    o_ref[0] += jnp.sum(jnp.abs(p_ref[...] - t_ref[...]) * m)
    o_ref[1] += jnp.sum(m)


def masked_l1_loss(pred2, target2, mask2):
    """Equivalent of nn.L1Loss()(pred.masked_select(mask), target.masked_select(mask)).
    pred2/target2/mask2: [M, D] fp32."""
    M, D = pred2.shape
    tm = _pick_tile(M, 1024, 8)
    spec = pl.BlockSpec((tm, D), lambda i: (i, 0))
    sums = pl.pallas_call(
        _masked_l1_kernel,
        out_shape=jax.ShapeDtypeStruct((2,), jnp.float32),
        grid=(M // tm,),
        in_specs=[spec, spec, spec],
        out_specs=pl.BlockSpec(memory_space=pltpu.MemorySpace.SMEM),
        compiler_params=pltpu.CompilerParams(
            dimension_semantics=("arbitrary",),
            vmem_limit_bytes=VMEM_LIMIT),
    )(pred2, target2, mask2)
    # NOTE: NaN if the mask is empty -- caller guarantees a non-empty mask (as in the
    # reference module), without a device->host sync on the hot path.
    return sums[0] / sums[1]


# ----------------------------------------------------------------------------
# Model pieces (TransformerModel / SpecHead)
# ----------------------------------------------------------------------------
def transformer_encoder(x2, pos2, bias3, tparams, seq_len, num_heads):
    """TransformerModel forward (output_all_encoded_layers=False, head_mask=None).
    x2: [M, input_dim], pos2: [M, H], bias3: [M//T, 1, T]."""
    ip = tparams["input"]
    # TransformerInputRepresentations: Linear -> (+pos_enc) -> LayerNorm -> dropout(id)
    h = fused_linear(x2, ip["w"], ip["b"], residual=pos2, ln=(ip["ln_g"], ip["ln_b"]))

    for layer in tparams["layers"]:
        qkv = fused_linear(h, layer["qkv_w"], layer["qkv_b"])
        ctx = attention(qkv, bias3, num_heads, seq_len)
        h = fused_linear(ctx, layer["o_w"], layer["o_b"],
                         residual=h, ln=(layer["attn_ln_g"], layer["attn_ln_b"]))
        inter = fused_linear(h, layer["i_w"], layer["i_b"], activation="gelu")
        h = fused_linear(inter, layer["out_w"], layer["out_b"],
                         residual=h, ln=(layer["out_ln_g"], layer["out_ln_b"]))
    return h  # [M, H]


def spec_prediction_head(h, hp):
    """TransformerSpec(Score)PredictionHead: dense -> gelu -> LayerNorm -> output."""
    hs = fused_linear(h, hp["d_w"], hp["d_b"], activation="gelu",
                      ln=(hp["ln_g"], hp["ln_b"]))          # no residual, no zeros tensor
    return fused_linear(hs, hp["o_w"], hp["o_b"])


def masked_acoustic_model(spec_stacked, pos_enc, mask_label, attn_mask,
                          spec_target_stacked, params, *, num_heads):
    """TransformerForMaskedAcousticModel.forward (with labels -> (loss, pred)).
    The two encoder passes (mam / score) are stacked along batch and run once."""
    _, B, T, _ = spec_stacked.shape
    tparams = params["transformer"]
    H = tparams["input"]["w"].shape[1]
    M = 2 * B * T

    x2 = spec_stacked.astype(jnp.float32).reshape(M, -1)
    if pos_enc.ndim == 2:
        pos_enc = jnp.broadcast_to(pos_enc[None], (B, T, H))
    pos2 = jnp.concatenate([pos_enc, pos_enc], axis=0).reshape(M, H)

    bias = (1.0 - attn_mask.astype(jnp.float32)) * -10000.0          # [B, T]
    bias3 = jnp.concatenate([bias, bias], axis=0).reshape(2 * B, 1, T)

    seq = transformer_encoder(x2, pos2, bias3, tparams, T, num_heads)  # [2*B*T, H]
    seq_mam, seq_score = seq[:B * T], seq[B * T:]

    pred_mam = spec_prediction_head(seq_mam, params["spec_head"])       # [B*T, Dout]
    # TODO(synk): TransformerSpecScorePredictionHead definition is not in the reference
    # source; implemented with the same structure as TransformerSpecPredictionHead.
    pred_score = spec_prediction_head(seq_score, params["spec_score_head"])

    m2 = mask_label.reshape(B * T, -1).astype(jnp.float32)
    t_mam = spec_target_stacked[0].astype(jnp.float32).reshape(B * T, -1)
    t_score = spec_target_stacked[1].astype(jnp.float32).reshape(B * T, -1)

    masked_spec_loss = masked_l1_loss(pred_mam, t_mam, m2)
    score_spec_loss = masked_l1_loss(pred_score, t_score, m2)
    return [masked_spec_loss, score_spec_loss], pred_mam.reshape(B, T, -1)


# ----------------------------------------------------------------------------
# Expert wrapper
# ----------------------------------------------------------------------------
class UpstreamPretrainExpertPallas:
    """Pallas re-implementation of UpstreamPretrainExpert.forward (inference-mode dropout)."""

    def __init__(self, raw_params, num_heads):
        self.num_heads = num_heads
        self.params = prepare_params(raw_params)
        self._forward = jax.jit(
            functools.partial(masked_acoustic_model, num_heads=num_heads))

    def forward(self, data, records=None, global_step=1, log_step=1000, **kwargs):
        records = {} if records is None else records
        spec_masked, pos_enc, mask_label, attn_mask, spec_target = (
            data[0], data[1], data[2], data[3], data[4])
        spec_stacked = jnp.stack([jnp.asarray(x, jnp.float32) for x in spec_masked])
        target_stacked = jnp.stack([jnp.asarray(x, jnp.float32) for x in spec_target])
        # NOTE: the reference asserts mask_label.sum() > 0 here; that check forces a
        # device->host sync every step, so it is left to the data pipeline (task.py).
        loss, pred_spec_mam = self._forward(
            spec_stacked, jnp.asarray(pos_enc, jnp.float32),
            jnp.asarray(mask_label), jnp.asarray(attn_mask, jnp.float32),
            target_stacked, self.params)
        # TODO(synk): tensorboard spectrogram plotting (plot_spectrogram_to_numpy) omitted.
        del global_step, log_step, pred_spec_mam
        return loss, records


# ----------------------------------------------------------------------------
# Parameter init (normal(0, 0.02) weights, zero biases, LN g=1 b=0) + bf16/fusion prep
# ----------------------------------------------------------------------------
def init_params(key, input_dim, hidden, num_layers, num_heads, intermediate, output_dim,
                init_range=0.02):
    keys = iter(jax.random.split(key, 128))

    def lin(in_d, out_d):
        w = jax.random.normal(next(keys), (in_d, out_d), jnp.float32) * init_range
        return w, jnp.zeros((out_d,), jnp.float32)

    def ln():
        return jnp.ones((hidden,), jnp.float32), jnp.zeros((hidden,), jnp.float32)

    iw, ib = lin(input_dim, hidden)
    ig, ibeta = ln()
    transformer = {"hidden": hidden, "num_heads": num_heads,
                   "input": {"w": iw, "b": ib, "ln_g": ig, "ln_b": ibeta},
                   "layers": []}
    for _ in range(num_layers):
        qw, qb = lin(hidden, hidden)
        kw, kb = lin(hidden, hidden)
        vw, vb = lin(hidden, hidden)
        ow, ob = lin(hidden, hidden)
        a_g, a_b = ln()
        iw2, ib2 = lin(hidden, intermediate)
        ow2, ob2 = lin(intermediate, hidden)
        o_g, o_b = ln()
        transformer["layers"].append({
            "q_w": qw, "q_b": qb, "k_w": kw, "k_b": kb, "v_w": vw, "v_b": vb,
            "o_w": ow, "o_b": ob, "attn_ln_g": a_g, "attn_ln_b": a_b,
            "i_w": iw2, "i_b": ib2, "out_w": ow2, "out_b": ob2,
            "out_ln_g": o_g, "out_ln_b": o_b})

    def head():
        dw, db = lin(hidden, hidden)
        g, b = ln()
        ow, ob = lin(hidden, output_dim)
        return {"d_w": dw, "d_b": db, "ln_g": g, "ln_b": b, "o_w": ow, "o_b": ob}

    return {"transformer": transformer, "spec_head": head(), "spec_score_head": head()}


def prepare_params(raw):
    """Fuse Q/K/V weights into one [H, 3H] matmul and store matmul weights in bf16
    (MXU-native, halves weight HBM traffic); biases and LN params stay fp32."""
    bf = lambda x: x.astype(jnp.bfloat16)
    t = raw["transformer"]
    layers = []
    for L in t["layers"]:
        layers.append({
            "qkv_w": bf(jnp.concatenate([L["q_w"], L["k_w"], L["v_w"]], axis=1)),
            "qkv_b": jnp.concatenate([L["q_b"], L["k_b"], L["v_b"]]),
            "o_w": bf(L["o_w"]), "o_b": L["o_b"],
            "attn_ln_g": L["attn_ln_g"], "attn_ln_b": L["attn_ln_b"],
            "i_w": bf(L["i_w"]), "i_b": L["i_b"],
            "out_w": bf(L["out_w"]), "out_b": L["out_b"],
            "out_ln_g": L["out_ln_g"], "out_ln_b": L["out_ln_b"],
        })

    def head(h):
        return {"d_w": bf(h["d_w"]), "d_b": h["d_b"],
                "ln_g": h["ln_g"], "ln_b": h["ln_b"],
                "o_w": bf(h["o_w"]), "o_b": h["o_b"]}

    return {"transformer": {"input": {"w": bf(t["input"]["w"]), "b": t["input"]["b"],
                                      "ln_g": t["input"]["ln_g"],
                                      "ln_b": t["input"]["ln_b"]},
                            "layers": layers},
            "spec_head": head(raw["spec_head"]),
            "spec_score_head": head(raw["spec_score_head"])}


# ----------------------------------------------------------------------------
if __name__ == "__main__":
    B, T = 2, 8
    INPUT_DIM = 32
    HIDDEN = 32
    NUM_LAYERS = 2
    NUM_HEADS = 4
    INTERMEDIATE = 64
    OUTPUT_DIM = INPUT_DIM  # output_dim=None in the module -> falls back to input_dim

    key = jax.random.PRNGKey(0)
    kp, kd = jax.random.split(key)
    raw_params = init_params(kp, INPUT_DIM, HIDDEN, NUM_LAYERS, NUM_HEADS,
                             INTERMEDIATE, OUTPUT_DIM)

    ks = jax.random.split(kd, 8)
    spec_masked_mam = jax.random.normal(ks[0], (B, T, INPUT_DIM), jnp.float32)
    spec_masked_score = jax.random.normal(ks[1], (B, T, INPUT_DIM), jnp.float32)
    spec_target_mam = jax.random.normal(ks[2], (B, T, INPUT_DIM), jnp.float32)
    spec_target_score = jax.random.normal(ks[3], (B, T, INPUT_DIM), jnp.float32)
    pos_enc = jax.random.normal(ks[4], (T, HIDDEN), jnp.float32)  # 2D -> expanded to [B,T,H]
    mask_frames = jax.random.uniform(ks[5], (B, T)) < 0.5
    mask_frames = mask_frames.at[0, 0].set(True)                  # guarantee > 0 masked
    mask_label = jnp.broadcast_to(mask_frames[:, :, None], (B, T, INPUT_DIM))
    attn_mask = jnp.ones((B, T), jnp.float32).at[1, 6:].set(0.0)  # ragged batch

    data = [[spec_masked_mam, spec_masked_score], pos_enc, mask_label, attn_mask,
            [spec_target_mam, spec_target_score]]

    expert = UpstreamPretrainExpertPallas(raw_params, num_heads=NUM_HEADS)
    loss, records = expert.forward(data, records={}, global_step=1, log_step=1000)
    jax.block_until_ready(loss)
    print("KERNEL_OK")
</pallas_src>

<mosaic_0001>
module attributes {stable_mosaic.version = 11 : i64} {
  func.func @_linear_kernel(%arg0: i32, %arg1: i32, %arg2: i32, %arg3: memref<32x32xf32, #tpu.memory_space<vmem>>, %arg4: memref<32x96xbf16, #tpu.memory_space<vmem>>, %arg5: memref<1x96xf32, #tpu.memory_space<vmem>>, %arg6: memref<32x96xf32, #tpu.memory_space<vmem>>, %arg7: memref<32x96xf32, #tpu.memory_space<vmem>>) attributes {dimension_semantics = [#tpu.dimension_semantics<parallel>, #tpu.dimension_semantics<parallel>, #tpu.dimension_semantics<arbitrary>], iteration_bounds = array<i64: 1, 1, 1>, scalar_prefetch = 0 : i64, scratch_operands = 1 : i64, tpu.core_type = #tpu.core_type<tc>, window_params = [{transform_indices = @transform_0, window_bounds = array<i64: 32, 32>}, {transform_indices = @transform_1, window_bounds = array<i64: 32, 96>}, {transform_indices = @transform_2, window_bounds = array<i64: 1, 96>}, {transform_indices = @transform_3, window_bounds = array<i64: 32, 96>}]} {
    %c0_i32 = arith.constant 0 : i32
    %0 = arith.cmpi eq, %arg2, %c0_i32 : i32
    %1 = arith.extui %0 : i1 to i32
    %c0_i32_0 = arith.constant 0 : i32
    %2 = arith.cmpi ne, %1, %c0_i32_0 : i32
    scf.if %2 {
      %cst_10 = arith.constant 0.000000e+00 : f32
      %13 = vector.broadcast %cst_10 : f32 to vector<32x96xf32>
      %c0_11 = arith.constant 0 : index
      %c0_12 = arith.constant 0 : index
      %14 = vector.load %arg7[%c0_11, %c0_12] : memref<32x96xf32, #tpu.memory_space<vmem>>, vector<32x96xf32>
      tpu.vector_store %arg7[%c0_11, %c0_12], %13 {strides = array<i32>} : memref<32x96xf32, #tpu.memory_space<vmem>>, vector<32x96xf32>,
    } else {
    }
    %c0 = arith.constant 0 : index
    %c0_1 = arith.constant 0 : index
    %3 = vector.load %arg7[%c0, %c0_1] : memref<32x96xf32, #tpu.memory_space<vmem>>, vector<32x96xf32>
    %c0_2 = arith.constant 0 : index
    %c0_3 = arith.constant 0 : index
    %4 = vector.load %arg3[%c0_2, %c0_3] : memref<32x32xf32, #tpu.memory_space<vmem>>, vector<32x32xf32>
    %5 = arith.truncf %4 : vector<32x32xf32> to vector<32x32xbf16>
    %c0_4 = arith.constant 0 : index
    %c0_5 = arith.constant 0 : index
    %6 = vector.load %arg4[%c0_4, %c0_5] : memref<32x96xbf16, #tpu.memory_space<vmem>>, vector<32x96xbf16>
    %cst = arith.constant dense<0.000000e+00> : vector<32x96xf32>
    %7 = tpu.matmul %5, %6, %cst {dimension_numbers = #tpu.dot_dimension_numbers<[1], [0], [0], [1], [0, 0, 1, 1], [], []>} : vector<32x32xbf16>, vector<32x96xbf16>, vector<32x96xf32> -> vector<32x96xf32>
    %8 = arith.addf %3, %7 : vector<32x96xf32>
    %c0_6 = arith.constant 0 : index
    %c0_7 = arith.constant 0 : index
    %9 = vector.load %arg7[%c0_6, %c0_7] : memref<32x96xf32, #tpu.memory_space<vmem>>, vector<32x96xf32>
    tpu.vector_store %arg7[%c0_6, %c0_7], %8 {strides = array<i32>} : memref<32x96xf32, #tpu.memory_space<vmem>>, vector<32x96xf32>,
    %c0_i32_8 = arith.constant 0 : i32
    %10 = arith.cmpi eq, %arg2, %c0_i32_8 : i32
    %11 = arith.extui %10 : i1 to i32
    %c0_i32_9 = arith.constant 0 : i32
    %12 = arith.cmpi ne, %11, %c0_i32_9 : i32
    scf.if %12 {
      %c0_10 = arith.constant 0 : index
      %c0_11 = arith.constant 0 : index
      %13 = vector.load %arg7[%c0_10, %c0_11] : memref<32x96xf32, #tpu.memory_space<vmem>>, vector<32x96xf32>
      %c0_12 = arith.constant 0 : index
      %c0_13 = arith.constant 0 : index
      %14 = vector.load %arg5[%c0_12, %c0_13] : memref<1x96xf32, #tpu.memory_space<vmem>>, vector<1x96xf32>
      %15 = vector.broadcast %14 : vector<1x96xf32> to vector<32x96xf32>
      %16 = arith.addf %13, %15 : vector<32x96xf32>
      %c0_14 = arith.constant 0 : index
      %c0_15 = arith.constant 0 : index
      %17 = vector.load %arg6[%c0_14, %c0_15] : memref<32x96xf32, #tpu.memory_space<vmem>>, vector<32x96xf32>
      tpu.vector_store %arg6[%c0_14, %c0_15], %16 {strides = array<i32>} : memref<32x96xf32, #tpu.memory_space<vmem>>, vector<32x96xf32>,
    } else {
    }
    return
  }
  func.func @transform_0(%arg0: i32, %arg1: i32, %arg2: i32) -> (i32, i32) {
    %c0_i32 = arith.constant 0 : i32
    return %arg0, %arg2 : i32, i32
  }
  func.func @transform_1(%arg0: i32, %arg1: i32, %arg2: i32) -> (i32, i32) {
    %c0_i32 = arith.constant 0 : i32
    return %arg2, %arg1 : i32, i32
  }
  func.func @transform_2(%arg0: i32, %arg1: i32, %arg2: i32) -> (i32, i32) {
    %c0_i32 = arith.constant 0 : i32
    %c0_i32_0 = arith.constant 0 : i32
    return %c0_i32, %arg1 : i32, i32
  }
  func.func @transform_3(%arg0: i32, %arg1: i32, %arg2: i32) -> (i32, i32) {
    %c0_i32 = arith.constant 0 : i32
    return %arg0, %arg1 : i32, i32
  }
}

module attributes {stable_mosaic.version = 11 : i64} {
  func.func @_linear_kernel(%arg0: i32, %arg1: i32, %arg2: i32, %arg3: memref<32x32xf32, #tpu.memory_space<vmem>>, %arg4: memref<32x32xbf16, #tpu.memory_space<vmem>>, %arg5: memref<1x32xf32, #tpu.memory_space<vmem>>, %arg6: memref<32x32xf32, #tpu.memory_space<vmem>>, %arg7: memref<1x32xf32, #tpu.memory_space<vmem>>, %arg8: memref<1x32xf32, #tpu.memory_space<vmem>>, %arg9: memref<32x32xf32, #tpu.memory_space<vmem>>, %arg10: memref<32x32xf32, #tpu.memory_space<vmem>>) attributes {dimension_semantics = [#tpu.dimension_semantics<parallel>, #tpu.dimension_semantics<parallel>, #tpu.dimension_semantics<arbitrary>], iteration_bounds = array<i64: 1, 1, 1>, scalar_prefetch = 0 : i64, scratch_operands = 1 : i64, tpu.core_type = #tpu.core_type<tc>, window_params = [{transform_indices = @transform_0, window_bounds = array<i64: 32, 32>}, {transform_indices = @transform_1, window_bounds = array<i64: 32, 32>}, {transform_indices = @transform_2, window_bounds = array<i64: 1, 32>}, {transform_indices = @transform_3, window_bounds = array<i64: 32, 32>}, {transform_indices = @transform_4, window_bounds = array<i64: 1, 32>}, {transform_indices = @transform_5, window_bounds = array<i64: 1, 32>}, {transform_indices = @transform_6, window_bounds = array<i64: 32, 32>}]} {
    %c0_i32 = arith.constant 0 : i32
    %0 = arith.cmpi eq, %arg2, %c0_i32 : i32
    %1 = arith.extui %0 : i1 to i32
    %c0_i32_0 = arith.constant 0 : i32
    %2 = arith.cmpi ne, %1, %c0_i32_0 : i32
    scf.if %2 {
      %cst_10 = arith.constant 0.000000e+00 : f32
      %13 = vector.broadcast %cst_10 : f32 to vector<32x32xf32>
      %c0_11 = arith.constant 0 : index
      %c0_12 = arith.constant 0 : index
      %14 = vector.load %arg10[%c0_11, %c0_12] : memref<32x32xf32, #tpu.memory_space<vmem>>, vector<32x32xf32>
      tpu.vector_store %arg10[%c0_11, %c0_12], %13 {strides = array<i32>} : memref<32x32xf32, #tpu.memory_space<vmem>>, vector<32x32xf32>,
    } else {
    }
    %c0 = arith.constant 0 : index
    %c0_1 = arith.constant 0 : index
    %3 = vector.load %arg10[%c0, %c0_1] : memref<32x32xf32, #tpu.memory_space<vmem>>, vector<32x32xf32>
    %c0_2 = arith.constant 0 : index
    %c0_3 = arith.constant 0 : index
    %4 = vector.load %arg3[%c0_2, %c0_3] : memref<32x32xf32, #tpu.memory_space<vmem>>, vector<32x32xf32>
    %5 = arith.truncf %4 : vector<32x32xf32> to vector<32x32xbf16>
    %c0_4 = arith.constant 0 : index
    %c0_5 = arith.constant 0 : index
    %6 = vector.load %arg4[%c0_4, %c0_5] : memref<32x32xbf16, #tpu.memory_space<vmem>>, vector<32x32xbf16>
    %cst = arith.constant dense<0.000000e+00> : vector<32x32xf32>
    %7 = tpu.matmul %5, %6, %cst {dimension_numbers = #tpu.dot_dimension_numbers<[1], [0], [0], [1], [0, 0, 1, 1], [], []>} : vector<32x32xbf16>, vector<32x32xbf16>, vector<32x32xf32> -> vector<32x32xf32>
    %8 = arith.addf %3, %7 : vector<32x32xf32>
    %c0_6 = arith.constant 0 : index
    %c0_7 = arith.constant 0 : index
    %9 = vector.load %arg10[%c0_6, %c0_7] : memref<32x32xf32, #tpu.memory_space<vmem>>, vector<32x32xf32>
    tpu.vector_store %arg10[%c0_6, %c0_7], %8 {strides = array<i32>} : memref<32x32xf32, #tpu.memory_space<vmem>>, vector<32x32xf32>,
    %c0_i32_8 = arith.constant 0 : i32
    %10 = arith.cmpi eq, %arg2, %c0_i32_8 : i32
    %11 = arith.extui %10 : i1 to i32
    %c0_i32_9 = arith.constant 0 : i32
    %12 = arith.cmpi ne, %11, %c0_i32_9 : i32
    scf.if %12 {
      %c0_10 = arith.constant 0 : index
      %c0_11 = arith.constant 0 : index
      %13 = vector.load %arg10[%c0_10, %c0_11] : memref<32x32xf32, #tpu.memory_space<vmem>>, vector<32x32xf32>
      %c0_12 = arith.constant 0 : index
      %c0_13 = arith.constant 0 : index
      %14 = vector.load %arg5[%c0_12, %c0_13] : memref<1x32xf32, #tpu.memory_space<vmem>>, vector<1x32xf32>
      %15 = vector.broadcast %14 : vector<1x32xf32> to vector<32x32xf32>
      %16 = arith.addf %13, %15 : vector<32x32xf32>
      %c0_14 = arith.constant 0 : index
      %c0_15 = arith.constant 0 : index
      %17 = vector.load %arg6[%c0_14, %c0_15] : memref<32x32xf32, #tpu.memory_space<vmem>>, vector<32x32xf32>
      %18 = arith.addf %16, %17 : vector<32x32xf32>
      %cst_16 = arith.constant dense<0.000000e+00> : vector<32xf32>
      %19 = vector.multi_reduction <add>, %18, %cst_16 [1] : vector<32x32xf32> to vector<32xf32>
      %20 = vector.shape_cast %19 : vector<32xf32> to vector<32x1xf32>
      %cst_17 = arith.constant 3.200000e+01 : f32
      %21 = vector.broadcast %cst_17 : f32 to vector<32x1xf32>
      %22 = arith.divf %20, %21 : vector<32x1xf32>
      %23 = vector.broadcast %22 : vector<32x1xf32> to vector<32x32xf32>
      %24 = arith.subf %18, %23 : vector<32x32xf32>
      %25 = arith.mulf %24, %24 : vector<32x32xf32>
      %cst_18 = arith.constant dense<0.000000e+00> : vector<32xf32>
      %26 = vector.multi_reduction <add>, %25, %cst_18 [1] : vector<32x32xf32> to vector<32xf32>
      %27 = vector.shape_cast %26 : vector<32xf32> to vector<32x1xf32>
      %cst_19 = arith.constant 3.200000e+01 : f32
      %28 = vector.broadcast %cst_19 : f32 to vector<32x1xf32>
      %29 = arith.divf %27, %28 : vector<32x1xf32>
      %cst_20 = arith.constant 9.99999996E-13 : f32
      %30 = vector.broadcast %cst_20 : f32 to vector<32x1xf32>
      %31 = arith.addf %29, %30 : vector<32x1xf32>
      %32 = math.rsqrt %31 : vector<32x1xf32>
      %33 = vector.broadcast %32 : vector<32x1xf32> to vector<32x32xf32>
      %34 = arith.mulf %24, %33 : vector<32x32xf32>
      %c0_21 = arith.constant 0 : index
      %c0_22 = arith.constant 0 : index
      %35 = vector.load %arg7[%c0_21, %c0_22] : memref<1x32xf32, #tpu.memory_space<vmem>>, vector<1x32xf32>
      %36 = vector.broadcast %35 : vector<1x32xf32> to vector<32x32xf32>
      %37 = arith.mulf %34, %36 : vector<32x32xf32>
      %c0_23 = arith.constant 0 : index
      %c0_24 = arith.constant 0 : index
      %38 = vector.load %arg8[%c0_23, %c0_24] : memref<1x32xf32, #tpu.memory_space<vmem>>, vector<1x32xf32>
      %39 = vector.broadcast %38 : vector<1x32xf32> to vector<32x32xf32>
      %40 = arith.addf %37, %39 : vector<32x32xf32>
      %c0_25 = arith.constant 0 : index
      %c0_26 = arith.constant 0 : index
      %41 = vector.load %arg9[%c0_25, %c0_26] : memref<32x32xf32, #tpu.memory_space<vmem>>, vector<32x32xf32>
      tpu.vector_store %arg9[%c0_25, %c0_26], %40 {strides = array<i32>} : memref<32x32xf32, #tpu.memory_space<vmem>>, vector<32x32xf32>,
    } else {
    }
    return
  }
  func.func @transform_0(%arg0: i32, %arg1: i32, %arg2: i32) -> (i32, i32) {
    %c0_i32 = arith.constant 0 : i32
    return %arg0, %arg2 : i32, i32
  }
  func.func @transform_1(%arg0: i32, %arg1: i32, %arg2: i32) -> (i32, i32) {
    %c0_i32 = arith.constant 0 : i32
    return %arg2, %arg1 : i32, i32
  }
  func.func @transform_2(%arg0: i32, %arg1: i32, %arg2: i32) -> (i32, i32) {
    %c0_i32 = arith.constant 0 : i32
    %c0_i32_0 = arith.constant 0 : i32
    return %c0_i32, %arg1 : i32, i32
  }
  func.func @transform_3(%arg0: i32, %arg1: i32, %arg2: i32) -> (i32, i32) {
    %c0_i32 = arith.constant 0 : i32
    return %arg0, %arg1 : i32, i32
  }
  func.func @transform_4(%arg0: i32, %arg1: i32, %arg2: i32) -> (i32, i32) {
    %c0_i32 = arith.constant 0 : i32
    %c0_i32_0 = arith.constant 0 : i32
    return %c0_i32, %arg1 : i32, i32
  }
  func.func @transform_5(%arg0: i32, %arg1: i32, %arg2: i32) -> (i32, i32) {
    %c0_i32 = arith.constant 0 : i32
    %c0_i32_0 = arith.constant 0 : i32
    return %c0_i32, %arg1 : i32, i32
  }
  func.func @transform_6(%arg0: i32, %arg1: i32, %arg2: i32) -> (i32, i32) {
    %c0_i32 = arith.constant 0 : i32
    return %arg0, %arg1 : i32, i32
  }
}

module attributes {stable_mosaic.version = 11 : i64} {
  func.func @_linear_kernel(%arg0: i32, %arg1: i32, %arg2: i32, %arg3: memref<32x32xf32, #tpu.memory_space<vmem>>, %arg4: memref<32x64xbf16, #tpu.memory_space<vmem>>, %arg5: memref<1x64xf32, #tpu.memory_space<vmem>>, %arg6: memref<32x64xf32, #tpu.memory_space<vmem>>, %arg7: memref<32x64xf32, #tpu.memory_space<vmem>>) attributes {dimension_semantics = [#tpu.dimension_semantics<parallel>, #tpu.dimension_semantics<parallel>, #tpu.dimension_semantics<arbitrary>], iteration_bounds = array<i64: 1, 1, 1>, scalar_prefetch = 0 : i64, scratch_operands = 1 : i64, tpu.core_type = #tpu.core_type<tc>, window_params = [{transform_indices = @transform_0, window_bounds = array<i64: 32, 32>}, {transform_indices = @transform_1, window_bounds = array<i64: 32, 64>}, {transform_indices = @transform_2, window_bounds = array<i64: 1, 64>}, {transform_indices = @transform_3, window_bounds = array<i64: 32, 64>}]} {
    %c0_i32 = arith.constant 0 : i32
    %0 = arith.cmpi eq, %arg2, %c0_i32 : i32
    %1 = arith.extui %0 : i1 to i32
    %c0_i32_0 = arith.constant 0 : i32
    %2 = arith.cmpi ne, %1, %c0_i32_0 : i32
    scf.if %2 {
      %cst_10 = arith.constant 0.000000e+00 : f32
      %13 = vector.broadcast %cst_10 : f32 to vector<32x64xf32>
      %c0_11 = arith.constant 0 : index
      %c0_12 = arith.constant 0 : index
      %14 = vector.load %arg7[%c0_11, %c0_12] : memref<32x64xf32, #tpu.memory_space<vmem>>, vector<32x64xf32>
      tpu.vector_store %arg7[%c0_11, %c0_12], %13 {strides = array<i32>} : memref<32x64xf32, #tpu.memory_space<vmem>>, vector<32x64xf32>,
    } else {
    }
    %c0 = arith.constant 0 : index
    %c0_1 = arith.constant 0 : index
    %3 = vector.load %arg7[%c0, %c0_1] : memref<32x64xf32, #tpu.memory_space<vmem>>, vector<32x64xf32>
    %c0_2 = arith.constant 0 : index
    %c0_3 = arith.constant 0 : index
    %4 = vector.load %arg3[%c0_2, %c0_3] : memref<32x32xf32, #tpu.memory_space<vmem>>, vector<32x32xf32>
    %5 = arith.truncf %4 : vector<32x32xf32> to vector<32x32xbf16>
    %c0_4 = arith.constant 0 : index
    %c0_5 = arith.constant 0 : index
    %6 = vector.load %arg4[%c0_4, %c0_5] : memref<32x64xbf16, #tpu.memory_space<vmem>>, vector<32x64xbf16>
    %cst = arith.constant dense<0.000000e+00> : vector<32x64xf32>
    %7 = tpu.matmul %5, %6, %cst {dimension_numbers = #tpu.dot_dimension_numbers<[1], [0], [0], [1], [0, 0, 1, 1], [], []>} : vector<32x32xbf16>, vector<32x64xbf16>, vector<32x64xf32> -> vector<32x64xf32>
    %8 = arith.addf %3, %7 : vector<32x64xf32>
    %c0_6 = arith.constant 0 : index
    %c0_7 = arith.constant 0 : index
    %9 = vector.load %arg7[%c0_6, %c0_7] : memref<32x64xf32, #tpu.memory_space<vmem>>, vector<32x64xf32>
    tpu.vector_store %arg7[%c0_6, %c0_7], %8 {strides = array<i32>} : memref<32x64xf32, #tpu.memory_space<vmem>>, vector<32x64xf32>,
    %c0_i32_8 = arith.constant 0 : i32
    %10 = arith.cmpi eq, %arg2, %c0_i32_8 : i32
    %11 = arith.extui %10 : i1 to i32
    %c0_i32_9 = arith.constant 0 : i32
    %12 = arith.cmpi ne, %11, %c0_i32_9 : i32
    scf.if %12 {
      %c0_10 = arith.constant 0 : index
      %c0_11 = arith.constant 0 : index
      %13 = vector.load %arg7[%c0_10, %c0_11] : memref<32x64xf32, #tpu.memory_space<vmem>>, vector<32x64xf32>
      %c0_12 = arith.constant 0 : index
      %c0_13 = arith.constant 0 : index
      %14 = vector.load %arg5[%c0_12, %c0_13] : memref<1x64xf32, #tpu.memory_space<vmem>>, vector<1x64xf32>
      %15 = vector.broadcast %14 : vector<1x64xf32> to vector<32x64xf32>
      %16 = arith.addf %13, %15 : vector<32x64xf32>
      %cst_14 = arith.constant 5.000000e-01 : f32
      %17 = vector.broadcast %cst_14 : f32 to vector<32x64xf32>
      %18 = arith.mulf %17, %16 : vector<32x64xf32>
      %cst_15 = arith.constant 4.471500e-02 : f32
      %19 = vector.broadcast %cst_15 : f32 to vector<32x64xf32>
      %20 = arith.mulf %19, %16 : vector<32x64xf32>
      %21 = arith.mulf %20, %16 : vector<32x64xf32>
      %22 = arith.mulf %21, %16 : vector<32x64xf32>
      %23 = arith.addf %16, %22 : vector<32x64xf32>
      %cst_16 = arith.constant 0.797884583 : f32
      %24 = vector.broadcast %cst_16 : f32 to vector<32x64xf32>
      %25 = arith.mulf %24, %23 : vector<32x64xf32>
      %26 = math.tanh %25 : vector<32x64xf32>
      %cst_17 = arith.constant 1.000000e+00 : f32
      %27 = vector.broadcast %cst_17 : f32 to vector<32x64xf32>
      %28 = arith.addf %27, %26 : vector<32x64xf32>
      %29 = arith.mulf %18, %28 : vector<32x64xf32>
      %c0_18 = arith.constant 0 : index
      %c0_19 = arith.constant 0 : index
      %30 = vector.load %arg6[%c0_18, %c0_19] : memref<32x64xf32, #tpu.memory_space<vmem>>, vector<32x64xf32>
      tpu.vector_store %arg6[%c0_18, %c0_19], %29 {strides = array<i32>} : memref<32x64xf32, #tpu.memory_space<vmem>>, vector<32x64xf32>,
    } else {
    }
    return
  }
  func.func @transform_0(%arg0: i32, %arg1: i32, %arg2: i32) -> (i32, i32) {
    %c0_i32 = arith.constant 0 : i32
    return %arg0, %arg2 : i32, i32
  }
  func.func @transform_1(%arg0: i32, %arg1: i32, %arg2: i32) -> (i32, i32) {
    %c0_i32 = arith.constant 0 : i32
    return %arg2, %arg1 : i32, i32
  }
  func.func @transform_2(%arg0: i32, %arg1: i32, %arg2: i32) -> (i32, i32) {
    %c0_i32 = arith.constant 0 : i32
    %c0_i32_0 = arith.constant 0 : i32
    return %c0_i32, %arg1 : i32, i32
  }
  func.func @transform_3(%arg0: i32, %arg1: i32, %arg2: i32) -> (i32, i32) {
    %c0_i32 = arith.constant 0 : i32
    return %arg0, %arg1 : i32, i32
  }
}

module attributes {stable_mosaic.version = 11 : i64} {
  func.func @_attn_kernel(%arg0: i32, %arg1: memref<8x96xf32, #tpu.memory_space<vmem>>, %arg2: memref<1x1x8xf32, #tpu.memory_space<vmem>>, %arg3: memref<8x32xf32, #tpu.memory_space<vmem>>) attributes {dimension_semantics = [#tpu.dimension_semantics<parallel>], iteration_bounds = array<i64: 4>, scalar_prefetch = 0 : i64, scratch_operands = 0 : i64, tpu.core_type = #tpu.core_type<tc>, window_params = [{transform_indices = @transform_0, window_bounds = array<i64: 8, 96>}, {transform_indices = @transform_1, window_bounds = array<i64: 1, 1, 8>}, {transform_indices = @transform_2, window_bounds = array<i64: 8, 32>}]} {
    %c0 = arith.constant 0 : index
    %c0_0 = arith.constant 0 : index
    %0 = vector.load %arg1[%c0, %c0_0] : memref<8x96xf32, #tpu.memory_space<vmem>>, vector<8x96xf32>
    %c0_1 = arith.constant 0 : index
    %c0_2 = arith.constant 0 : index
    %c0_3 = arith.constant 0 : index
    %1 = vector.load %arg2[%c0_1, %c0_2, %c0_3] : memref<1x1x8xf32, #tpu.memory_space<vmem>>, vector<1x1x8xf32>
    %2 = vector.shape_cast %1 : vector<1x1x8xf32> to vector<1x8xf32>
    %3 = vector.extract_strided_slice %0 {offsets = [0, 0], sizes = [8, 32], strides = [1, 1]} : vector<8x96xf32> to vector<8x32xf32>
    %cst = arith.constant 0.353553385 : f32
    %4 = vector.broadcast %cst : f32 to vector<8x32xf32>
    %5 = arith.mulf %3, %4 : vector<8x32xf32>
    %6 = arith.truncf %5 : vector<8x32xf32> to vector<8x32xbf16>
    %7 = vector.extract_strided_slice %0 {offsets = [0, 32], sizes = [8, 32], strides = [1, 1]} : vector<8x96xf32> to vector<8x32xf32>
    %8 = arith.truncf %7 : vector<8x32xf32> to vector<8x32xbf16>
    %9 = vector.extract_strided_slice %0 {offsets = [0, 64], sizes = [8, 32], strides = [1, 1]} : vector<8x96xf32> to vector<8x32xf32>
    %10 = arith.truncf %9 : vector<8x32xf32> to vector<8x32xbf16>
    %11 = vector.extract_strided_slice %6 {offsets = [0, 0], sizes = [8, 8], strides = [1, 1]} : vector<8x32xbf16> to vector<8x8xbf16>
    %12 = vector.extract_strided_slice %8 {offsets = [0, 0], sizes = [8, 8], strides = [1, 1]} : vector<8x32xbf16> to vector<8x8xbf16>
    %cst_4 = arith.constant dense<0.000000e+00> : vector<8x8xf32>
    %13 = tpu.matmul %11, %12, %cst_4 {dimension_numbers = #tpu.dot_dimension_numbers<[1], [1], [0], [0], [0, 0, 1, 0], [], []>} : vector<8x8xbf16>, vector<8x8xbf16>, vector<8x8xf32> -> vector<8x8xf32>
    %14 = vector.broadcast %2 : vector<1x8xf32> to vector<8x8xf32>
    %15 = arith.addf %13, %14 : vector<8x8xf32>
    %cst_5 = arith.constant dense<0xFF800000> : vector<8xf32>
    %16 = vector.multi_reduction <maximumf>, %15, %cst_5 [1] : vector<8x8xf32> to vector<8xf32>
    %17 = vector.shape_cast %16 : vector<8xf32> to vector<8x1xf32>
    %18 = vector.broadcast %17 : vector<8x1xf32> to vector<8x8xf32>
    %19 = arith.subf %15, %18 : vector<8x8xf32>
    %20 = math.exp %19 : vector<8x8xf32>
    %cst_6 = arith.constant dense<0.000000e+00> : vector<8xf32>
    %21 = vector.multi_reduction <add>, %20, %cst_6 [1] : vector<8x8xf32> to vector<8xf32>
    %22 = vector.shape_cast %21 : vector<8xf32> to vector<8x1xf32>
    %23 = tpu.reciprocal %22 {approx = true} : vector<8x1xf32> -> vector<8x1xf32>
    %24 = vector.broadcast %23 : vector<8x1xf32> to vector<8x8xf32>
    %25 = arith.mulf %20, %24 : vector<8x8xf32>
    %26 = arith.truncf %25 : vector<8x8xf32> to vector<8x8xbf16>
    %27 = vector.extract_strided_slice %10 {offsets = [0, 0], sizes = [8, 8], strides = [1, 1]} : vector<8x32xbf16> to vector<8x8xbf16>
    %cst_7 = arith.constant dense<0.000000e+00> : vector<8x8xf32>
    %28 = tpu.matmul %26, %27, %cst_7 {dimension_numbers = #tpu.dot_dimension_numbers<[1], [0], [0], [1], [0, 0, 1, 1], [], []>} : vector<8x8xbf16>, vector<8x8xbf16>, vector<8x8xf32> -> vector<8x8xf32>
    %29 = vector.extract_strided_slice %6 {offsets = [0, 8], sizes = [8, 8], strides = [1, 1]} : vector<8x32xbf16> to vector<8x8xbf16>
    %30 = vector.extract_strided_slice %8 {offsets = [0, 8], sizes = [8, 8], strides = [1, 1]} : vector<8x32xbf16> to vector<8x8xbf16>
    %cst_8 = arith.constant dense<0.000000e+00> : vector<8x8xf32>
    %31 = tpu.matmul %29, %30, %cst_8 {dimension_numbers = #tpu.dot_dimension_numbers<[1], [1], [0], [0], [0, 0, 1, 0], [], []>} : vector<8x8xbf16>, vector<8x8xbf16>, vector<8x8xf32> -> vector<8x8xf32>
    %32 = vector.broadcast %2 : vector<1x8xf32> to vector<8x8xf32>
    %33 = arith.addf %31, %32 : vector<8x8xf32>
    %cst_9 = arith.constant dense<0xFF800000> : vector<8xf32>
    %34 = vector.multi_reduction <maximumf>, %33, %cst_9 [1] : vector<8x8xf32> to vector<8xf32>
    %35 = vector.shape_cast %34 : vector<8xf32> to vector<8x1xf32>
    %36 = vector.broadcast %35 : vector<8x1xf32> to vector<8x8xf32>
    %37 = arith.subf %33, %36 : vector<8x8xf32>
    %38 = math.exp %37 : vector<8x8xf32>
    %cst_10 = arith.constant dense<0.000000e+00> : vector<8xf32>
    %39 = vector.multi_reduction <add>, %38, %cst_10 [1] : vector<8x8xf32> to vector<8xf32>
    %40 = vector.shape_cast %39 : vector<8xf32> to vector<8x1xf32>
    %41 = tpu.reciprocal %40 {approx = true} : vector<8x1xf32> -> vector<8x1xf32>
    %42 = vector.broadcast %41 : vector<8x1xf32> to vector<8x8xf32>
    %43 = arith.mulf %38, %42 : vector<8x8xf32>
    %44 = arith.truncf %43 : vector<8x8xf32> to vector<8x8xbf16>
    %45 = vector.extract_strided_slice %10 {offsets = [0, 8], sizes = [8, 8], strides = [1, 1]} : vector<8x32xbf16> to vector<8x8xbf16>
    %cst_11 = arith.constant dense<0.000000e+00> : vector<8x8xf32>
    %46 = tpu.matmul %44, %45, %cst_11 {dimension_numbers = #tpu.dot_dimension_numbers<[1], [0], [0], [1], [0, 0, 1, 1], [], []>} : vector<8x8xbf16>, vector<8x8xbf16>, vector<8x8xf32> -> vector<8x8xf32>
    %47 = vector.extract_strided_slice %6 {offsets = [0, 16], sizes = [8, 8], strides = [1, 1]} : vector<8x32xbf16> to vector<8x8xbf16>
    %48 = vector.extract_strided_slice %8 {offsets = [0, 16], sizes = [8, 8], strides = [1, 1]} : vector<8x32xbf16> to vector<8x8xbf16>
    %cst_12 = arith.constant dense<0.000000e+00> : vector<8x8xf32>
    %49 = tpu.matmul %47, %48, %cst_12 {dimension_numbers = #tpu.dot_dimension_numbers<[1], [1], [0], [0], [0, 0, 1, 0], [], []>} : vector<8x8xbf16>, vector<8x8xbf16>, vector<8x8xf32> -> vector<8x8xf32>
    %50 = vector.broadcast %2 : vector<1x8xf32> to vector<8x8xf32>
    %51 = arith.addf %49, %50 : vector<8x8xf32>
    %cst_13 = arith.constant dense<0xFF800000> : vector<8xf32>
    %52 = vector.multi_reduction <maximumf>, %51, %cst_13 [1] : vector<8x8xf32> to vector<8xf32>
    %53 = vector.shape_cast %52 : vector<8xf32> to vector<8x1xf32>
    %54 = vector.broadcast %53 : vector<8x1xf32> to vector<8x8xf32>
    %55 = arith.subf %51, %54 : vector<8x8xf32>
    %56 = math.exp %55 : vector<8x8xf32>
    %cst_14 = arith.constant dense<0.000000e+00> : vector<8xf32>
    %57 = vector.multi_reduction <add>, %56, %cst_14 [1] : vector<8x8xf32> to vector<8xf32>
    %58 = vector.shape_cast %57 : vector<8xf32> to vector<8x1xf32>
    %59 = tpu.reciprocal %58 {approx = true} : vector<8x1xf32> -> vector<8x1xf32>
    %60 = vector.broadcast %59 : vector<8x1xf32> to vector<8x8xf32>
    %61 = arith.mulf %56, %60 : vector<8x8xf32>
    %62 = arith.truncf %61 : vector<8x8xf32> to vector<8x8xbf16>
    %63 = vector.extract_strided_slice %10 {offsets = [0, 16], sizes = [8, 8], strides = [1, 1]} : vector<8x32xbf16> to vector<8x8xbf16>
    %cst_15 = arith.constant dense<0.000000e+00> : vector<8x8xf32>
    %64 = tpu.matmul %62, %63, %cst_15 {dimension_numbers = #tpu.dot_dimension_numbers<[1], [0], [0], [1], [0, 0, 1, 1], [], []>} : vector<8x8xbf16>, vector<8x8xbf16>, vector<8x8xf32> -> vector<8x8xf32>
    %65 = vector.extract_strided_slice %6 {offsets = [0, 24], sizes = [8, 8], strides = [1, 1]} : vector<8x32xbf16> to vector<8x8xbf16>
    %66 = vector.extract_strided_slice %8 {offsets = [0, 24], sizes = [8, 8], strides = [1, 1]} : vector<8x32xbf16> to vector<8x8xbf16>
    %cst_16 = arith.constant dense<0.000000e+00> : vector<8x8xf32>
    %67 = tpu.matmul %65, %66, %cst_16 {dimension_numbers = #tpu.dot_dimension_numbers<[1], [1], [0], [0], [0, 0, 1, 0], [], []>} : vector<8x8xbf16>, vector<8x8xbf16>, vector<8x8xf32> -> vector<8x8xf32>
    %68 = vector.broadcast %2 : vector<1x8xf32> to vector<8x8xf32>
    %69 = arith.addf %67, %68 : vector<8x8xf32>
    %cst_17 = arith.constant dense<0xFF800000> : vector<8xf32>
    %70 = vector.multi_reduction <maximumf>, %69, %cst_17 [1] : vector<8x8xf32> to vector<8xf32>
    %71 = vector.shape_cast %70 : vector<8xf32> to vector<8x1xf32>
    %72 = vector.broadcast %71 : vector<8x1xf32> to vector<8x8xf32>
    %73 = arith.subf %69, %72 : vector<8x8xf32>
    %74 = math.exp %73 : vector<8x8xf32>
    %cst_18 = arith.constant dense<0.000000e+00> : vector<8xf32>
    %75 = vector.multi_reduction <add>, %74, %cst_18 [1] : vector<8x8xf32> to vector<8xf32>
    %76 = vector.shape_cast %75 : vector<8xf32> to vector<8x1xf32>
    %77 = tpu.reciprocal %76 {approx = true} : vector<8x1xf32> -> vector<8x1xf32>
    %78 = vector.broadcast %77 : vector<8x1xf32> to vector<8x8xf32>
    %79 = arith.mulf %74, %78 : vector<8x8xf32>
    %80 = arith.truncf %79 : vector<8x8xf32> to vector<8x8xbf16>
    %81 = vector.extract_strided_slice %10 {offsets = [0, 24], sizes = [8, 8], strides = [1, 1]} : vector<8x32xbf16> to vector<8x8xbf16>
    %cst_19 = arith.constant dense<0.000000e+00> : vector<8x8xf32>
    %82 = tpu.matmul %80, %81, %cst_19 {dimension_numbers = #tpu.dot_dimension_numbers<[1], [0], [0], [1], [0, 0, 1, 1], [], []>} : vector<8x8xbf16>, vector<8x8xbf16>, vector<8x8xf32> -> vector<8x8xf32>
    %83 = tpu.concatenate %28, %46, %64, %82 in 1 : vector<8x8xf32>, vector<8x8xf32>, vector<8x8xf32>, vector<8x8xf32> -> vector<8x32xf32>
    %c0_20 = arith.constant 0 : index
    %c0_21 = arith.constant 0 : index
    %84 = vector.load %arg3[%c0_20, %c0_21] : memref<8x32xf32, #tpu.memory_space<vmem>>, vector<8x32xf32>
    tpu.vector_store %arg3[%c0_20, %c0_21], %83 {strides = array<i32>} : memref<8x32xf32, #tpu.memory_space<vmem>>, vector<8x32xf32>,
    return
  }
  func.func @transform_0(%arg0: i32) -> (i32, i32) {
    %c0_i32 = arith.constant 0 : i32
    %c0_i32_0 = arith.constant 0 : i32
    return %arg0, %c0_i32 : i32, i32
  }
  func.func @transform_1(%arg0: i32) -> (i32, i32, i32) {
    %c0_i32 = arith.constant 0 : i32
    %c0_i32_0 = arith.constant 0 : i32
    %c0_i32_1 = arith.constant 0 : i32
    return %arg0, %c0_i32, %c0_i32_0 : i32, i32, i32
  }
  func.func @transform_2(%arg0: i32) -> (i32, i32) {
    %c0_i32 = arith.constant 0 : i32
    %c0_i32_0 = arith.constant 0 : i32
    return %arg0, %c0_i32 : i32, i32
  }
}

module attributes {stable_mosaic.version = 11 : i64} {
  func.func @_linear_kernel(%arg0: i32, %arg1: i32, %arg2: i32, %arg3: memref<32x64xf32, #tpu.memory_space<vmem>>, %arg4: memref<64x32xbf16, #tpu.memory_space<vmem>>, %arg5: memref<1x32xf32, #tpu.memory_space<vmem>>, %arg6: memref<32x32xf32, #tpu.memory_space<vmem>>, %arg7: memref<1x32xf32, #tpu.memory_space<vmem>>, %arg8: memref<1x32xf32, #tpu.memory_space<vmem>>, %arg9: memref<32x32xf32, #tpu.memory_space<vmem>>, %arg10: memref<32x32xf32, #tpu.memory_space<vmem>>) attributes {dimension_semantics = [#tpu.dimension_semantics<parallel>, #tpu.dimension_semantics<parallel>, #tpu.dimension_semantics<arbitrary>], iteration_bounds = array<i64: 1, 1, 1>, scalar_prefetch = 0 : i64, scratch_operands = 1 : i64, tpu.core_type = #tpu.core_type<tc>, window_params = [{transform_indices = @transform_0, window_bounds = array<i64: 32, 64>}, {transform_indices = @transform_1, window_bounds = array<i64: 64, 32>}, {transform_indices = @transform_2, window_bounds = array<i64: 1, 32>}, {transform_indices = @transform_3, window_bounds = array<i64: 32, 32>}, {transform_indices = @transform_4, window_bounds = array<i64: 1, 32>}, {transform_indices = @transform_5, window_bounds = array<i64: 1, 32>}, {transform_indices = @transform_6, window_bounds = array<i64: 32, 32>}]} {
    %c0_i32 = arith.constant 0 : i32
    %0 = arith.cmpi eq, %arg2, %c0_i32 : i32
    %1 = arith.extui %0 : i1 to i32
    %c0_i32_0 = arith.constant 0 : i32
    %2 = arith.cmpi ne, %1, %c0_i32_0 : i32
    scf.if %2 {
      %cst_10 = arith.constant 0.000000e+00 : f32
      %13 = vector.broadcast %cst_10 : f32 to vector<32x32xf32>
      %c0_11 = arith.constant 0 : index
      %c0_12 = arith.constant 0 : index
      %14 = vector.load %arg10[%c0_11, %c0_12] : memref<32x32xf32, #tpu.memory_space<vmem>>, vector<32x32xf32>
      tpu.vector_store %arg10[%c0_11, %c0_12], %13 {strides = array<i32>} : memref<32x32xf32, #tpu.memory_space<vmem>>, vector<32x32xf32>,
    } else {
    }
    %c0 = arith.constant 0 : index
    %c0_1 = arith.constant 0 : index
    %3 = vector.load %arg10[%c0, %c0_1] : memref<32x32xf32, #tpu.memory_space<vmem>>, vector<32x32xf32>
    %c0_2 = arith.constant 0 : index
    %c0_3 = arith.constant 0 : index
    %4 = vector.load %arg3[%c0_2, %c0_3] : memref<32x64xf32, #tpu.memory_space<vmem>>, vector<32x64xf32>
    %5 = arith.truncf %4 : vector<32x64xf32> to vector<32x64xbf16>
    %c0_4 = arith.constant 0 : index
    %c0_5 = arith.constant 0 : index
    %6 = vector.load %arg4[%c0_4, %c0_5] : memref<64x32xbf16, #tpu.memory_space<vmem>>, vector<64x32xbf16>
    %cst = arith.constant dense<0.000000e+00> : vector<32x32xf32>
    %7 = tpu.matmul %5, %6, %cst {dimension_numbers = #tpu.dot_dimension_numbers<[1], [0], [0], [1], [0, 0, 1, 1], [], []>} : vector<32x64xbf16>, vector<64x32xbf16>, vector<32x32xf32> -> vector<32x32xf32>
    %8 = arith.addf %3, %7 : vector<32x32xf32>
    %c0_6 = arith.constant 0 : index
    %c0_7 = arith.constant 0 : index
    %9 = vector.load %arg10[%c0_6, %c0_7] : memref<32x32xf32, #tpu.memory_space<vmem>>, vector<32x32xf32>
    tpu.vector_store %arg10[%c0_6, %c0_7], %8 {strides = array<i32>} : memref<32x32xf32, #tpu.memory_space<vmem>>, vector<32x32xf32>,
    %c0_i32_8 = arith.constant 0 : i32
    %10 = arith.cmpi eq, %arg2, %c0_i32_8 : i32
    %11 = arith.extui %10 : i1 to i32
    %c0_i32_9 = arith.constant 0 : i32
    %12 = arith.cmpi ne, %11, %c0_i32_9 : i32
    scf.if %12 {
      %c0_10 = arith.constant 0 : index
      %c0_11 = arith.constant 0 : index
      %13 = vector.load %arg10[%c0_10, %c0_11] : memref<32x32xf32, #tpu.memory_space<vmem>>, vector<32x32xf32>
      %c0_12 = arith.constant 0 : index
      %c0_13 = arith.constant 0 : index
      %14 = vector.load %arg5[%c0_12, %c0_13] : memref<1x32xf32, #tpu.memory_space<vmem>>, vector<1x32xf32>
      %15 = vector.broadcast %14 : vector<1x32xf32> to vector<32x32xf32>
      %16 = arith.addf %13, %15 : vector<32x32xf32>
      %c0_14 = arith.constant 0 : index
      %c0_15 = arith.constant 0 : index
      %17 = vector.load %arg6[%c0_14, %c0_15] : memref<32x32xf32, #tpu.memory_space<vmem>>, vector<32x32xf32>
      %18 = arith.addf %16, %17 : vector<32x32xf32>
      %cst_16 = arith.constant dense<0.000000e+00> : vector<32xf32>
      %19 = vector.multi_reduction <add>, %18, %cst_16 [1] : vector<32x32xf32> to vector<32xf32>
      %20 = vector.shape_cast %19 : vector<32xf32> to vector<32x1xf32>
      %cst_17 = arith.constant 3.200000e+01 : f32
      %21 = vector.broadcast %cst_17 : f32 to vector<32x1xf32>
      %22 = arith.divf %20, %21 : vector<32x1xf32>
      %23 = vector.broadcast %22 : vector<32x1xf32> to vector<32x32xf32>
      %24 = arith.subf %18, %23 : vector<32x32xf32>
      %25 = arith.mulf %24, %24 : vector<32x32xf32>
      %cst_18 = arith.constant dense<0.000000e+00> : vector<32xf32>
      %26 = vector.multi_reduction <add>, %25, %cst_18 [1] : vector<32x32xf32> to vector<32xf32>
      %27 = vector.shape_cast %26 : vector<32xf32> to vector<32x1xf32>
      %cst_19 = arith.constant 3.200000e+01 : f32
      %28 = vector.broadcast %cst_19 : f32 to vector<32x1xf32>
      %29 = arith.divf %27, %28 : vector<32x1xf32>
      %cst_20 = arith.constant 9.99999996E-13 : f32
      %30 = vector.broadcast %cst_20 : f32 to vector<32x1xf32>
      %31 = arith.addf %29, %30 : vector<32x1xf32>
      %32 = math.rsqrt %31 : vector<32x1xf32>
      %33 = vector.broadcast %32 : vector<32x1xf32> to vector<32x32xf32>
      %34 = arith.mulf %24, %33 : vector<32x32xf32>
      %c0_21 = arith.constant 0 : index
      %c0_22 = arith.constant 0 : index
      %35 = vector.load %arg7[%c0_21, %c0_22] : memref<1x32xf32, #tpu.memory_space<vmem>>, vector<1x32xf32>
      %36 = vector.broadcast %35 : vector<1x32xf32> to vector<32x32xf32>
      %37 = arith.mulf %34, %36 : vector<32x32xf32>
      %c0_23 = arith.constant 0 : index
      %c0_24 = arith.constant 0 : index
      %38 = vector.load %arg8[%c0_23, %c0_24] : memref<1x32xf32, #tpu.memory_space<vmem>>, vector<1x32xf32>
      %39 = vector.broadcast %38 : vector<1x32xf32> to vector<32x32xf32>
      %40 = arith.addf %37, %39 : vector<32x32xf32>
      %c0_25 = arith.constant 0 : index
      %c0_26 = arith.constant 0 : index
      %41 = vector.load %arg9[%c0_25, %c0_26] : memref<32x32xf32, #tpu.memory_space<vmem>>, vector<32x32xf32>
      tpu.vector_store %arg9[%c0_25, %c0_26], %40 {strides = array<i32>} : memref<32x32xf32, #tpu.memory_space<vmem>>, vector<32x32xf32>,
    } else {
    }
    return
  }
  func.func @transform_0(%arg0: i32, %arg1: i32, %arg2: i32) -> (i32, i32) {
    %c0_i32 = arith.constant 0 : i32
    return %arg0, %arg2 : i32, i32
  }
  func.func @transform_1(%arg0: i32, %arg1: i32, %arg2: i32) -> (i32, i32) {
    %c0_i32 = arith.constant 0 : i32
    return %arg2, %arg1 : i32, i32
  }
  func.func @transform_2(%arg0: i32, %arg1: i32, %arg2: i32) -> (i32, i32) {
    %c0_i32 = arith.constant 0 : i32
    %c0_i32_0 = arith.constant 0 : i32
    return %c0_i32, %arg1 : i32, i32
  }
  func.func @transform_3(%arg0: i32, %arg1: i32, %arg2: i32) -> (i32, i32) {
    %c0_i32 = arith.constant 0 : i32
    return %arg0, %arg1 : i32, i32
  }
  func.func @transform_4(%arg0: i32, %arg1: i32, %arg2: i32) -> (i32, i32) {
    %c0_i32 = arith.constant 0 : i32
    %c0_i32_0 = arith.constant 0 : i32
    return %c0_i32, %arg1 : i32, i32
  }
  func.func @transform_5(%arg0: i32, %arg1: i32, %arg2: i32) -> (i32, i32) {
    %c0_i32 = arith.constant 0 : i32
    %c0_i32_0 = arith.constant 0 : i32
    return %c0_i32, %arg1 : i32, i32
  }
  func.func @transform_6(%arg0: i32, %arg1: i32, %arg2: i32) -> (i32, i32) {
    %c0_i32 = arith.constant 0 : i32
    return %arg0, %arg1 : i32, i32
  }
}

module attributes {stable_mosaic.version = 11 : i64} {
  func.func @_linear_kernel(%arg0: i32, %arg1: i32, %arg2: i32, %arg3: memref<16x32xf32, #tpu.memory_space<vmem>>, %arg4: memref<32x32xbf16, #tpu.memory_space<vmem>>, %arg5: memref<1x32xf32, #tpu.memory_space<vmem>>, %arg6: memref<16x32xf32, #tpu.memory_space<vmem>>, %arg7: memref<16x32xf32, #tpu.memory_space<vmem>>) attributes {dimension_semantics = [#tpu.dimension_semantics<parallel>, #tpu.dimension_semantics<parallel>, #tpu.dimension_semantics<arbitrary>], iteration_bounds = array<i64: 1, 1, 1>, scalar_prefetch = 0 : i64, scratch_operands = 1 : i64, tpu.core_type = #tpu.core_type<tc>, window_params = [{transform_indices = @transform_0, window_bounds = array<i64: 16, 32>}, {transform_indices = @transform_1, window_bounds = array<i64: 32, 32>}, {transform_indices = @transform_2, window_bounds = array<i64: 1, 32>}, {transform_indices = @transform_3, window_bounds = array<i64: 16, 32>}]} {
    %c0_i32 = arith.constant 0 : i32
    %0 = arith.cmpi eq, %arg2, %c0_i32 : i32
    %1 = arith.extui %0 : i1 to i32
    %c0_i32_0 = arith.constant 0 : i32
    %2 = arith.cmpi ne, %1, %c0_i32_0 : i32
    scf.if %2 {
      %cst_10 = arith.constant 0.000000e+00 : f32
      %13 = vector.broadcast %cst_10 : f32 to vector<16x32xf32>
      %c0_11 = arith.constant 0 : index
      %c0_12 = arith.constant 0 : index
      %14 = vector.load %arg7[%c0_11, %c0_12] : memref<16x32xf32, #tpu.memory_space<vmem>>, vector<16x32xf32>
      tpu.vector_store %arg7[%c0_11, %c0_12], %13 {strides = array<i32>} : memref<16x32xf32, #tpu.memory_space<vmem>>, vector<16x32xf32>,
    } else {
    }
    %c0 = arith.constant 0 : index
    %c0_1 = arith.constant 0 : index
    %3 = vector.load %arg7[%c0, %c0_1] : memref<16x32xf32, #tpu.memory_space<vmem>>, vector<16x32xf32>
    %c0_2 = arith.constant 0 : index
    %c0_3 = arith.constant 0 : index
    %4 = vector.load %arg3[%c0_2, %c0_3] : memref<16x32xf32, #tpu.memory_space<vmem>>, vector<16x32xf32>
    %5 = arith.truncf %4 : vector<16x32xf32> to vector<16x32xbf16>
    %c0_4 = arith.constant 0 : index
    %c0_5 = arith.constant 0 : index
    %6 = vector.load %arg4[%c0_4, %c0_5] : memref<32x32xbf16, #tpu.memory_space<vmem>>, vector<32x32xbf16>
    %cst = arith.constant dense<0.000000e+00> : vector<16x32xf32>
    %7 = tpu.matmul %5, %6, %cst {dimension_numbers = #tpu.dot_dimension_numbers<[1], [0], [0], [1], [0, 0, 1, 1], [], []>} : vector<16x32xbf16>, vector<32x32xbf16>, vector<16x32xf32> -> vector<16x32xf32>
    %8 = arith.addf %3, %7 : vector<16x32xf32>
    %c0_6 = arith.constant 0 : index
    %c0_7 = arith.constant 0 : index
    %9 = vector.load %arg7[%c0_6, %c0_7] : memref<16x32xf32, #tpu.memory_space<vmem>>, vector<16x32xf32>
    tpu.vector_store %arg7[%c0_6, %c0_7], %8 {strides = array<i32>} : memref<16x32xf32, #tpu.memory_space<vmem>>, vector<16x32xf32>,
    %c0_i32_8 = arith.constant 0 : i32
    %10 = arith.cmpi eq, %arg2, %c0_i32_8 : i32
    %11 = arith.extui %10 : i1 to i32
    %c0_i32_9 = arith.constant 0 : i32
    %12 = arith.cmpi ne, %11, %c0_i32_9 : i32
    scf.if %12 {
      %c0_10 = arith.constant 0 : index
      %c0_11 = arith.constant 0 : index
      %13 = vector.load %arg7[%c0_10, %c0_11] : memref<16x32xf32, #tpu.memory_space<vmem>>, vector<16x32xf32>
      %c0_12 = arith.constant 0 : index
      %c0_13 = arith.constant 0 : index
      %14 = vector.load %arg5[%c0_12, %c0_13] : memref<1x32xf32, #tpu.memory_space<vmem>>, vector<1x32xf32>
      %15 = vector.broadcast %14 : vector<1x32xf32> to vector<16x32xf32>
      %16 = arith.addf %13, %15 : vector<16x32xf32>
      %c0_14 = arith.constant 0 : index
      %c0_15 = arith.constant 0 : index
      %17 = vector.load %arg6[%c0_14, %c0_15] : memref<16x32xf32, #tpu.memory_space<vmem>>, vector<16x32xf32>
      tpu.vector_store %arg6[%c0_14, %c0_15], %16 {strides = array<i32>} : memref<16x32xf32, #tpu.memory_space<vmem>>, vector<16x32xf32>,
    } else {
    }
    return
  }
  func.func @transform_0(%arg0: i32, %arg1: i32, %arg2: i32) -> (i32, i32) {
    %c0_i32 = arith.constant 0 : i32
    return %arg0, %arg2 : i32, i32
  }
  func.func @transform_1(%arg0: i32, %arg1: i32, %arg2: i32) -> (i32, i32) {
    %c0_i32 = arith.constant 0 : i32
    return %arg2, %arg1 : i32, i32
  }
  func.func @transform_2(%arg0: i32, %arg1: i32, %arg2: i32) -> (i32, i32) {
    %c0_i32 = arith.constant 0 : i32
    %c0_i32_0 = arith.constant 0 : i32
    return %c0_i32, %arg1 : i32, i32
  }
  func.func @transform_3(%arg0: i32, %arg1: i32, %arg2: i32) -> (i32, i32) {
    %c0_i32 = arith.constant 0 : i32
    return %arg0, %arg1 : i32, i32
  }
}

module attributes {stable_mosaic.version = 11 : i64} {
  func.func @_linear_kernel(%arg0: i32, %arg1: i32, %arg2: i32, %arg3: memref<16x32xf32, #tpu.memory_space<vmem>>, %arg4: memref<32x32xbf16, #tpu.memory_space<vmem>>, %arg5: memref<1x32xf32, #tpu.memory_space<vmem>>, %arg6: memref<1x32xf32, #tpu.memory_space<vmem>>, %arg7: memref<1x32xf32, #tpu.memory_space<vmem>>, %arg8: memref<16x32xf32, #tpu.memory_space<vmem>>, %arg9: memref<16x32xf32, #tpu.memory_space<vmem>>) attributes {dimension_semantics = [#tpu.dimension_semantics<parallel>, #tpu.dimension_semantics<parallel>, #tpu.dimension_semantics<arbitrary>], iteration_bounds = array<i64: 1, 1, 1>, scalar_prefetch = 0 : i64, scratch_operands = 1 : i64, tpu.core_type = #tpu.core_type<tc>, window_params = [{transform_indices = @transform_0, window_bounds = array<i64: 16, 32>}, {transform_indices = @transform_1, window_bounds = array<i64: 32, 32>}, {transform_indices = @transform_2, window_bounds = array<i64: 1, 32>}, {transform_indices = @transform_3, window_bounds = array<i64: 1, 32>}, {transform_indices = @transform_4, window_bounds = array<i64: 1, 32>}, {transform_indices = @transform_5, window_bounds = array<i64: 16, 32>}]} {
    %c0_i32 = arith.constant 0 : i32
    %0 = arith.cmpi eq, %arg2, %c0_i32 : i32
    %1 = arith.extui %0 : i1 to i32
    %c0_i32_0 = arith.constant 0 : i32
    %2 = arith.cmpi ne, %1, %c0_i32_0 : i32
    scf.if %2 {
      %cst_10 = arith.constant 0.000000e+00 : f32
      %13 = vector.broadcast %cst_10 : f32 to vector<16x32xf32>
      %c0_11 = arith.constant 0 : index
      %c0_12 = arith.constant 0 : index
      %14 = vector.load %arg9[%c0_11, %c0_12] : memref<16x32xf32, #tpu.memory_space<vmem>>, vector<16x32xf32>
      tpu.vector_store %arg9[%c0_11, %c0_12], %13 {strides = array<i32>} : memref<16x32xf32, #tpu.memory_space<vmem>>, vector<16x32xf32>,
    } else {
    }
    %c0 = arith.constant 0 : index
    %c0_1 = arith.constant 0 : index
    %3 = vector.load %arg9[%c0, %c0_1] : memref<16x32xf32, #tpu.memory_space<vmem>>, vector<16x32xf32>
    %c0_2 = arith.constant 0 : index
    %c0_3 = arith.constant 0 : index
    %4 = vector.load %arg3[%c0_2, %c0_3] : memref<16x32xf32, #tpu.memory_space<vmem>>, vector<16x32xf32>
    %5 = arith.truncf %4 : vector<16x32xf32> to vector<16x32xbf16>
    %c0_4 = arith.constant 0 : index
    %c0_5 = arith.constant 0 : index
    %6 = vector.load %arg4[%c0_4, %c0_5] : memref<32x32xbf16, #tpu.memory_space<vmem>>, vector<32x32xbf16>
    %cst = arith.constant dense<0.000000e+00> : vector<16x32xf32>
    %7 = tpu.matmul %5, %6, %cst {dimension_numbers = #tpu.dot_dimension_numbers<[1], [0], [0], [1], [0, 0, 1, 1], [], []>} : vector<16x32xbf16>, vector<32x32xbf16>, vector<16x32xf32> -> vector<16x32xf32>
    %8 = arith.addf %3, %7 : vector<16x32xf32>
    %c0_6 = arith.constant 0 : index
    %c0_7 = arith.constant 0 : index
    %9 = vector.load %arg9[%c0_6, %c0_7] : memref<16x32xf32, #tpu.memory_space<vmem>>, vector<16x32xf32>
    tpu.vector_store %arg9[%c0_6, %c0_7], %8 {strides = array<i32>} : memref<16x32xf32, #tpu.memory_space<vmem>>, vector<16x32xf32>,
    %c0_i32_8 = arith.constant 0 : i32
    %10 = arith.cmpi eq, %arg2, %c0_i32_8 : i32
    %11 = arith.extui %10 : i1 to i32
    %c0_i32_9 = arith.constant 0 : i32
    %12 = arith.cmpi ne, %11, %c0_i32_9 : i32
    scf.if %12 {
      %c0_10 = arith.constant 0 : index
      %c0_11 = arith.constant 0 : index
      %13 = vector.load %arg9[%c0_10, %c0_11] : memref<16x32xf32, #tpu.memory_space<vmem>>, vector<16x32xf32>
      %c0_12 = arith.constant 0 : index
      %c0_13 = arith.constant 0 : index
      %14 = vector.load %arg5[%c0_12, %c0_13] : memref<1x32xf32, #tpu.memory_space<vmem>>, vector<1x32xf32>
      %15 = vector.broadcast %14 : vector<1x32xf32> to vector<16x32xf32>
      %16 = arith.addf %13, %15 : vector<16x32xf32>
      %cst_14 = arith.constant 5.000000e-01 : f32
      %17 = vector.broadcast %cst_14 : f32 to vector<16x32xf32>
      %18 = arith.mulf %17, %16 : vector<16x32xf32>
      %cst_15 = arith.constant 4.471500e-02 : f32
      %19 = vector.broadcast %cst_15 : f32 to vector<16x32xf32>
      %20 = arith.mulf %19, %16 : vector<16x32xf32>
      %21 = arith.mulf %20, %16 : vector<16x32xf32>
      %22 = arith.mulf %21, %16 : vector<16x32xf32>
      %23 = arith.addf %16, %22 : vector<16x32xf32>
      %cst_16 = arith.constant 0.797884583 : f32
      %24 = vector.broadcast %cst_16 : f32 to vector<16x32xf32>
      %25 = arith.mulf %24, %23 : vector<16x32xf32>
      %26 = math.tanh %25 : vector<16x32xf32>
      %cst_17 = arith.constant 1.000000e+00 : f32
      %27 = vector.broadcast %cst_17 : f32 to vector<16x32xf32>
      %28 = arith.addf %27, %26 : vector<16x32xf32>
      %29 = arith.mulf %18, %28 : vector<16x32xf32>
      %cst_18 = arith.constant dense<0.000000e+00> : vector<16xf32>
      %30 = vector.multi_reduction <add>, %29, %cst_18 [1] : vector<16x32xf32> to vector<16xf32>
      %31 = vector.shape_cast %30 : vector<16xf32> to vector<16x1xf32>
      %cst_19 = arith.constant 3.200000e+01 : f32
      %32 = vector.broadcast %cst_19 : f32 to vector<16x1xf32>
      %33 = arith.divf %31, %32 : vector<16x1xf32>
      %34 = vector.broadcast %33 : vector<16x1xf32> to vector<16x32xf32>
      %35 = arith.subf %29, %34 : vector<16x32xf32>
      %36 = arith.mulf %35, %35 : vector<16x32xf32>
      %cst_20 = arith.constant dense<0.000000e+00> : vector<16xf32>
      %37 = vector.multi_reduction <add>, %36, %cst_20 [1] : vector<16x32xf32> to vector<16xf32>
      %38 = vector.shape_cast %37 : vector<16xf32> to vector<16x1xf32>
      %cst_21 = arith.constant 3.200000e+01 : f32
      %39 = vector.broadcast %cst_21 : f32 to vector<16x1xf32>
      %40 = arith.divf %38, %39 : vector<16x1xf32>
      %cst_22 = arith.constant 9.99999996E-13 : f32
      %41 = vector.broadcast %cst_22 : f32 to vector<16x1xf32>
      %42 = arith.addf %40, %41 : vector<16x1xf32>
      %43 = math.rsqrt %42 : vector<16x1xf32>
      %44 = vector.broadcast %43 : vector<16x1xf32> to vector<16x32xf32>
      %45 = arith.mulf %35, %44 : vector<16x32xf32>
      %c0_23 = arith.constant 0 : index
      %c0_24 = arith.constant 0 : index
      %46 = vector.load %arg6[%c0_23, %c0_24] : memref<1x32xf32, #tpu.memory_space<vmem>>, vector<1x32xf32>
      %47 = vector.broadcast %46 : vector<1x32xf32> to vector<16x32xf32>
      %48 = arith.mulf %45, %47 : vector<16x32xf32>
      %c0_25 = arith.constant 0 : index
      %c0_26 = arith.constant 0 : index
      %49 = vector.load %arg7[%c0_25, %c0_26] : memref<1x32xf32, #tpu.memory_space<vmem>>, vector<1x32xf32>
      %50 = vector.broadcast %49 : vector<1x32xf32> to vector<16x32xf32>
      %51 = arith.addf %48, %50 : vector<16x32xf32>
      %c0_27 = arith.constant 0 : index
      %c0_28 = arith.constant 0 : index
      %52 = vector.load %arg8[%c0_27, %c0_28] : memref<16x32xf32, #tpu.memory_space<vmem>>, vector<16x32xf32>
      tpu.vector_store %arg8[%c0_27, %c0_28], %51 {strides = array<i32>} : memref<16x32xf32, #tpu.memory_space<vmem>>, vector<16x32xf32>,
    } else {
    }
    return
  }
  func.func @transform_0(%arg0: i32, %arg1: i32, %arg2: i32) -> (i32, i32) {
    %c0_i32 = arith.constant 0 : i32
    return %arg0, %arg2 : i32, i32
  }
  func.func @transform_1(%arg0: i32, %arg1: i32, %arg2: i32) -> (i32, i32) {
    %c0_i32 = arith.constant 0 : i32
    return %arg2, %arg1 : i32, i32
  }
  func.func @transform_2(%arg0: i32, %arg1: i32, %arg2: i32) -> (i32, i32) {
    %c0_i32 = arith.constant 0 : i32
    %c0_i32_0 = arith.constant 0 : i32
    return %c0_i32, %arg1 : i32, i32
  }
  func.func @transform_3(%arg0: i32, %arg1: i32, %arg2: i32) -> (i32, i32) {
    %c0_i32 = arith.constant 0 : i32
    %c0_i32_0 = arith.constant 0 : i32
    return %c0_i32, %arg1 : i32, i32
  }
  func.func @transform_4(%arg0: i32, %arg1: i32, %arg2: i32) -> (i32, i32) {
    %c0_i32 = arith.constant 0 : i32
    %c0_i32_0 = arith.constant 0 : i32
    return %c0_i32, %arg1 : i32, i32
  }
  func.func @transform_5(%arg0: i32, %arg1: i32, %arg2: i32) -> (i32, i32) {
    %c0_i32 = arith.constant 0 : i32
    return %arg0, %arg1 : i32, i32
  }
}

module attributes {stable_mosaic.version = 11 : i64} {
  func.func @_masked_l1_kernel(%arg0: i32, %arg1: memref<16x32xf32, #tpu.memory_space<vmem>>, %arg2: memref<16x32xf32, #tpu.memory_space<vmem>>, %arg3: memref<16x32xf32, #tpu.memory_space<vmem>>, %arg4: memref<2xf32, #tpu.memory_space<smem>>) attributes {dimension_semantics = [#tpu.dimension_semantics<arbitrary>], iteration_bounds = array<i64: 1>, scalar_prefetch = 0 : i64, scratch_operands = 0 : i64, tpu.core_type = #tpu.core_type<tc>, window_params = [{transform_indices = @transform_0, window_bounds = array<i64: 16, 32>}, {transform_indices = @transform_1, window_bounds = array<i64: 16, 32>}, {transform_indices = @transform_2, window_bounds = array<i64: 16, 32>}, {transform_indices = @transform_3, window_bounds = array<i64: 2>}]} {
    %c0_i32 = arith.constant 0 : i32
    %0 = arith.cmpi eq, %arg0, %c0_i32 : i32
    %1 = arith.extui %0 : i1 to i32
    %c0_i32_0 = arith.constant 0 : i32
    %2 = arith.cmpi ne, %1, %c0_i32_0 : i32
    scf.if %2 {
      %cst_10 = arith.constant 0.000000e+00 : f32
      %c0_11 = arith.constant 0 : index
      %23 = memref.load %arg4[%c0_11] : memref<2xf32, #tpu.memory_space<smem>>
      memref.store %cst_10, %arg4[%c0_11] : memref<2xf32, #tpu.memory_space<smem>>
      %cst_12 = arith.constant 0.000000e+00 : f32
      %c1_13 = arith.constant 1 : index
      %24 = memref.load %arg4[%c1_13] : memref<2xf32, #tpu.memory_space<smem>>
      memref.store %cst_12, %arg4[%c1_13] : memref<2xf32, #tpu.memory_space<smem>>
    } else {
    }
    %c0 = arith.constant 0 : index
    %c0_1 = arith.constant 0 : index
    %3 = vector.load %arg3[%c0, %c0_1] : memref<16x32xf32, #tpu.memory_space<vmem>>, vector<16x32xf32>
    %c0_2 = arith.constant 0 : index
    %4 = memref.load %arg4[%c0_2] : memref<2xf32, #tpu.memory_space<smem>>
    %c0_3 = arith.constant 0 : index
    %c0_4 = arith.constant 0 : index
    %5 = vector.load %arg1[%c0_3, %c0_4] : memref<16x32xf32, #tpu.memory_space<vmem>>, vector<16x32xf32>
    %c0_5 = arith.constant 0 : index
    %c0_6 = arith.constant 0 : index
    %6 = vector.load %arg2[%c0_5, %c0_6] : memref<16x32xf32, #tpu.memory_space<vmem>>, vector<16x32xf32>
    %7 = arith.subf %5, %6 : vector<16x32xf32>
    %8 = math.absf %7 : vector<16x32xf32>
    %9 = arith.mulf %8, %3 : vector<16x32xf32>
    %10 = vector.shape_cast %9 : vector<16x32xf32> to vector<1x16x32xf32>
    %cst = arith.constant dense<0.000000e+00> : vector<1xf32>
    %11 = vector.multi_reduction <add>, %10, %cst [1, 2] : vector<1x16x32xf32> to vector<1xf32>
    %12 = vector.shape_cast %11 : vector<1xf32> to vector<1x1x1xf32>
    %13 = vector.extract %12[0, 0, 0] : f32 from vector<1x1x1xf32>
    %14 = arith.addf %4, %13 : f32
    %c0_7 = arith.constant 0 : index
    %15 = memref.load %arg4[%c0_7] : memref<2xf32, #tpu.memory_space<smem>>
    memref.store %14, %arg4[%c0_7] : memref<2xf32, #tpu.memory_space<smem>>
    %c1 = arith.constant 1 : index
    %16 = memref.load %arg4[%c1] : memref<2xf32, #tpu.memory_space<smem>>
    %17 = vector.shape_cast %3 : vector<16x32xf32> to vector<1x16x32xf32>
    %cst_8 = arith.constant dense<0.000000e+00> : vector<1xf32>
    %18 = vector.multi_reduction <add>, %17, %cst_8 [1, 2] : vector<1x16x32xf32> to vector<1xf32>
    %19 = vector.shape_cast %18 : vector<1xf32> to vector<1x1x1xf32>
    %20 = vector.extract %19[0, 0, 0] : f32 from vector<1x1x1xf32>
    %21 = arith.addf %16, %20 : f32
    %c1_9 = arith.constant 1 : index
    %22 = memref.load %arg4[%c1_9] : memref<2xf32, #tpu.memory_space<smem>>
    memref.store %21, %arg4[%c1_9] : memref<2xf32, #tpu.memory_space<smem>>
    return
  }
  func.func @transform_0(%arg0: i32) -> (i32, i32) {
    %c0_i32 = arith.constant 0 : i32
    %c0_i32_0 = arith.constant 0 : i32
    return %arg0, %c0_i32 : i32, i32
  }
  func.func @transform_1(%arg0: i32) -> (i32, i32) {
    %c0_i32 = arith.constant 0 : i32
    %c0_i32_0 = arith.constant 0 : i32
    return %arg0, %c0_i32 : i32, i32
  }
  func.func @transform_2(%arg0: i32) -> (i32, i32) {
    %c0_i32 = arith.constant 0 : i32
    %c0_i32_0 = arith.constant 0 : i32
    return %arg0, %c0_i32 : i32, i32
  }
  func.func @transform_3(%arg0: i32) -> i32 {
    %c0_i32 = arith.constant 0 : i32
    %c0_i32_0 = arith.constant 0 : i32
    return %c0_i32 : i32
  }
}

</mosaic_0001>

<llo_original>
// kernel: masked_acoustic_model.18
$region0: #{masked_acoustic_model.18}
  #allocation0 [shape = 'u32[]', space=smem, size = 0x4, offset = 0x4, fixed_abs, tag = 'smem constant byte address 0x4 - core index']
  #allocation1 [shape = 'u32[72,128]{1,0:T(1,128)}', space=vmem, size = 0x9000, scoped, tag = 'internal scratch']
  #allocation2 [shape = 'f32[32,96]{1,0:T(8,128)}', space=vmem, size = 0x4000, scoped, tag = 'scratch operand']
  %s0 = inlined_call_operand.vmem [shape: f32[32,32], index: 0, kind: input, shape index: {}]
  %s1 = inlined_call_operand.vmem [shape: bf16[32,96], index: 1, kind: input, shape index: {}]
  %s2 = inlined_call_operand.vmem [shape: f32[1,96], index: 2, kind: input, shape index: {}]
  %s3 = inlined_call_operand.vmem [shape: f32[32,96], index: 3, kind: output, shape index: {}]
  %s4 = sld [smem:[#allocation0]]
  $region30: #{masked_acoustic_model.18} parent=0
    _
  %s6 = ssub.s32 1, %s4
  %s7 = scalar_select 0, %s6, %s4
  // Predicated region
  $region2: #{masked_acoustic_model.18} parent=0 // pred_check
    _
  $region3: #{masked_acoustic_model.18} parent=0 // pred_check_branch
    %9 = sbr.rel (0) target = $region5
  $region4: #{masked_acoustic_model.18} parent=0 // pred_region
    _
  $region5: #{masked_acoustic_model.18} parent=0 // pred_fallthru
    _
  // Predicated region
  $region6: #{masked_acoustic_model.18} parent=0 // pred_check
    _
  $region7: #{masked_acoustic_model.18} parent=0 // pred_check_branch
    %11 = sbr.rel (0) target = $region9
  $region8: #{masked_acoustic_model.18} parent=0 // pred_region
    _
  $region9: #{masked_acoustic_model.18} parent=0 // pred_fallthru
    _
  // Predicated region
  $region10: #{masked_acoustic_model.18} parent=0 // pred_check
    _
  $region11: #{masked_acoustic_model.18} parent=0 // pred_check_branch
    %13 = sbr.rel (0) target = $region13
  $region12: #{masked_acoustic_model.18} parent=0 // pred_region
    _
  $region13: #{masked_acoustic_model.18} parent=0 // pred_fallthru
    _
  %p15 = scmp.eq.s32.totalorder 0, 0
  // Predicated region
  $region14: #{masked_acoustic_model.18} parent=0 // pred_check
    %p16 = pneg %p15
  $region15: #{masked_acoustic_model.18} parent=0 // pred_check_branch
    %18 = sbr.rel (%p16) target = $region17
  $region16: #{masked_acoustic_model.18} parent=0 // pred_region
    %vm19 = vcmask 785408
    %20 = vst.msk [vmem:[#allocation2] sm:$0xff] %vm19, 0.0
    %21 = vst.msk [vmem:[#allocation2 + $0x8] sm:$0xff] %vm19, 0.0
    %22 = vst.msk [vmem:[#allocation2 + $0x10] sm:$0xff] %vm19, 0.0
    %23 = vst.msk [vmem:[#allocation2 + $0x18] sm:$0xff] %vm19, 0.0
  $region17: #{masked_acoustic_model.18} parent=0 // pred_fallthru
    _
  %v24 = vld [vmem:[#allocation2] sm:$0xff]
  %v25 = vld [vmem:[#allocation2 + $0x8] sm:$0xff]
  %v26 = vld [vmem:[#allocation2 + $0x10] sm:$0xff]
  %v27 = vld [vmem:[#allocation2 + $0x18] sm:$0xff]
  %v28 = vld [vmem:[%s0] sm:$0xff]
  %v29 = vld [vmem:[%s0 + $0x8] sm:$0xff]
  %v30 = vld [vmem:[%s0 + $0x10] sm:$0xff]
  %v31 = vld [vmem:[%s0 + $0x18] sm:$0xff]
  %v32 = vpack.c.bf16 %v29, %v28
  %v33 = vpack.c.bf16 %v31, %v30
  %v34 = vld [vmem:[%s1] sm:$0xf]
  %v35 = vld [vmem:[%s1 + $0x4] sm:$0xf]
  %v36 = vld [vmem:[%s1 + $0x8] sm:$0xf]
  %v37 = vld [vmem:[%s1 + $0xc] sm:$0xf]
  %v42 = vunpack.c.l.b16 %v34
  %v43 = vunpack.c.l.b16 %v35
  %v44 = vunpack.c.l.b16 %v36
  %v45 = vunpack.c.l.b16 %v37
  %v46 = vpack.c.b16 %v43, %v42
  %v47 = vpack.c.b16 %v45, %v44
  %vm50 = vcmask 261120
  %v52 = vsel %vm50, %v32, 0
  %v55 = vsel %vm50, %v33, 0
  %57 = vmatpush.bf16.msra.mxu0 0
  %58 = vmatpush.bf16.msra.mxu0 0
  %59 = vmatpush.bf16.msra.mxu0 0
  %60 = vmatpush.bf16.msra.mxu0 0
  %61 = vmatpush.bf16.msra.mxu0 0
  %62 = vmatpush.bf16.msra.mxu0 0
  %63 = vmatpush.bf16.msra.mxu0 %v47
  %64 = vmatpush.bf16.msra.mxu0 %v46
  %65 = vmatmul.bf16.gmra.mxu0 %v52
  %v66 = vpop.f32.mrf.mxu0
  %v67 = vadd.f32 0.0, %v66
  %v68 = vpop.f32.mrf.mxu0
  %v69 = vadd.f32 0.0, %v68
  %70 = vmatmul.bf16.gmra.mxu0 %v55
  %v71 = vpop.f32.mrf.mxu0
  %v72 = vadd.f32 0.0, %v71
  %v73 = vpop.f32.mrf.mxu0
  %v74 = vadd.f32 0.0, %v73
  %75 = vdwg.mxu0
  %v76 = vadd.f32 %v24, %v67
  %v77 = vadd.f32 %v25, %v69
  %v78 = vadd.f32 %v26, %v72
  %v79 = vadd.f32 %v27, %v74
  %vm80 = vcmask 785408
  %81 = vst.msk [vmem:[#allocation2] sm:$0xff] %vm80, %v76
  %82 = vst.msk [vmem:[#allocation2 + $0x8] sm:$0xff] %vm80, %v77
  %83 = vst.msk [vmem:[#allocation2 + $0x10] sm:$0xff] %vm80, %v78
  %84 = vst.msk [vmem:[#allocation2 + $0x18] sm:$0xff] %vm80, %v79
  // Predicated region
  $region18: #{masked_acoustic_model.18} parent=0 // pred_check
    %p85 = pneg %p15
  $region19: #{masked_acoustic_model.18} parent=0 // pred_check_branch
    %87 = sbr.rel (%p85) target = $region21
  $region20: #{masked_acoustic_model.18} parent=0 // pred_region
    %v88 = vld [vmem:[#allocation2] sm:$0xff]
    %v89 = vld [vmem:[#allocation2 + $0x8] sm:$0xff]
    %v90 = vld [vmem:[#allocation2 + $0x10] sm:$0xff]
    %v91 = vld [vmem:[#allocation2 + $0x18] sm:$0xff]
    %v92 = vld [vmem:[%s2] sm:$0x1]
    %v94 = vperm.slane %v92, 0
    %v96 = vadd.f32 %v88, %v94
    %v97 = vadd.f32 %v89, %v94
    %v98 = vadd.f32 %v90, %v94
    %v99 = vadd.f32 %v91, %v94
    %100 = vst.msk [vmem:[%s3] sm:$0xff] %vm80, %v96
    %101 = vst.msk [vmem:[%s3 + $0x8] sm:$0xff] %vm80, %v97
    %102 = vst.msk [vmem:[%s3 + $0x10] sm:$0xff] %vm80, %v98
    %103 = vst.msk [vmem:[%s3 + $0x18] sm:$0xff] %vm80, %v99
  $region21: #{masked_acoustic_model.18} parent=0 // pred_fallthru
    _
  // Predicated region
  $region22: #{masked_acoustic_model.18} parent=0 // pred_check
    _
  $region23: #{masked_acoustic_model.18} parent=0 // pred_check_branch
    %105 = sbr.rel (0) target = $region25
  $region24: #{masked_acoustic_model.18} parent=0 // pred_region
    _
  $region25: #{masked_acoustic_model.18} parent=0 // pred_fallthru
    _
  // Predicated region
  $region26: #{masked_acoustic_model.18} parent=0 // pred_check
    _
  $region27: #{masked_acoustic_model.18} parent=0 // pred_check_branch
    %107 = sbr.rel (0) target = $region29
  $region28: #{masked_acoustic_model.18} parent=0 // pred_region
    _
  $region29: #{masked_acoustic_model.18} parent=0 // pred_fallthru
    _

// kernel: masked_acoustic_model.17
$region0: #{masked_acoustic_model.17}
  #allocation0 [shape = 'u32[]', space=smem, size = 0x4, offset = 0x4, fixed_abs, tag = 'smem constant byte address 0x4 - core index']
  #allocation1 [shape = 'u32[72,128]{1,0:T(1,128)}', space=vmem, size = 0x9000, scoped, tag = 'internal scratch']
  #allocation2 [shape = 'f32[32,32]{1,0:T(8,128)}', space=vmem, size = 0x4000, scoped, tag = 'scratch operand']
  %s0 = inlined_call_operand.vmem [shape: f32[32,32], index: 0, kind: input, shape index: {}]
  %s1 = inlined_call_operand.vmem [shape: bf16[32,32], index: 1, kind: input, shape index: {}]
  %s2 = inlined_call_operand.vmem [shape: f32[1,32], index: 2, kind: input, shape index: {}]
  %s3 = inlined_call_operand.vmem [shape: f32[32,32], index: 3, kind: input, shape index: {}]
  %s4 = inlined_call_operand.vmem [shape: f32[1,32], index: 4, kind: input, shape index: {}]
  %s5 = inlined_call_operand.vmem [shape: f32[1,32], index: 5, kind: input, shape index: {}]
  %s6 = inlined_call_operand.vmem [shape: f32[32,32], index: 6, kind: output, shape index: {}]
  %s7 = sld [smem:[#allocation0]]
  $region42: #{masked_acoustic_model.17} parent=0
    _
  %s9 = ssub.s32 1, %s7
  %s10 = scalar_select 0, %s9, %s7
  // Predicated region
  $region2: #{masked_acoustic_model.17} parent=0 // pred_check
    _
  $region3: #{masked_acoustic_model.17} parent=0 // pred_check_branch
    %12 = sbr.rel (0) target = $region5
  $region4: #{masked_acoustic_model.17} parent=0 // pred_region
    _
  $region5: #{masked_acoustic_model.17} parent=0 // pred_fallthru
    _
  // Predicated region
  $region6: #{masked_acoustic_model.17} parent=0 // pred_check
    _
  $region7: #{masked_acoustic_model.17} parent=0 // pred_check_branch
    %14 = sbr.rel (0) target = $region9
  $region8: #{masked_acoustic_model.17} parent=0 // pred_region
    _
  $region9: #{masked_acoustic_model.17} parent=0 // pred_fallthru
    _
  // Predicated region
  $region10: #{masked_acoustic_model.17} parent=0 // pred_check
    _
  $region11: #{masked_acoustic_model.17} parent=0 // pred_check_branch
    %16 = sbr.rel (0) target = $region13
  $region12: #{masked_acoustic_model.17} parent=0 // pred_region
    _
  $region13: #{masked_acoustic_model.17} parent=0 // pred_fallthru
    _
  // Predicated region
  $region14: #{masked_acoustic_model.17} parent=0 // pred_check
    _
  $region15: #{masked_acoustic_model.17} parent=0 // pred_check_branch
    %18 = sbr.rel (0) target = $region17
  $region16: #{masked_acoustic_model.17} parent=0 // pred_region
    _
  $region17: #{masked_acoustic_model.17} parent=0 // pred_fallthru
    _
  // Predicated region
  $region18: #{masked_acoustic_model.17} parent=0 // pred_check
    _
  $region19: #{masked_acoustic_model.17} parent=0 // pred_check_branch
    %20 = sbr.rel (0) target = $region21
  $region20: #{masked_acoustic_model.17} parent=0 // pred_region
    _
  $region21: #{masked_acoustic_model.17} parent=0 // pred_fallthru
    _
  // Predicated region
  $region22: #{masked_acoustic_model.17} parent=0 // pred_check
    _
  $region23: #{masked_acoustic_model.17} parent=0 // pred_check_branch
    %22 = sbr.rel (0) target = $region25
  $region24: #{masked_acoustic_model.17} parent=0 // pred_region
    _
  $region25: #{masked_acoustic_model.17} parent=0 // pred_fallthru
    _
  %p24 = scmp.eq.s32.totalorder 0, 0
  // Predicated region
  $region26: #{masked_acoustic_model.17} parent=0 // pred_check
    %p25 = pneg %p24
  $region27: #{masked_acoustic_model.17} parent=0 // pred_check_branch
    %27 = sbr.rel (%p25) target = $region29
  $region28: #{masked_acoustic_model.17} parent=0 // pred_region
    %vm28 = vcmask 261120
    %29 = vst.msk [vmem:[#allocation2] sm:$0xff] %vm28, 0.0
    %30 = vst.msk [vmem:[#allocation2 + $0x8] sm:$0xff] %vm28, 0.0
    %31 = vst.msk [vmem:[#allocation2 + $0x10] sm:$0xff] %vm28, 0.0
    %32 = vst.msk [vmem:[#allocation2 + $0x18] sm:$0xff] %vm28, 0.0
  $region29: #{masked_acoustic_model.17} parent=0 // pred_fallthru
    _
  %v33 = vld [vmem:[#allocation2] sm:$0xff]
  %v34 = vld [vmem:[#allocation2 + $0x8] sm:$0xff]
  %v35 = vld [vmem:[#allocation2 + $0x10] sm:$0xff]
  %v36 = vld [vmem:[#allocation2 + $0x18] sm:$0xff]
  %v37 = vld [vmem:[%s0] sm:$0xff]
  %v38 = vld [vmem:[%s0 + $0x8] sm:$0xff]
  %v39 = vld [vmem:[%s0 + $0x10] sm:$0xff]
  %v40 = vld [vmem:[%s0 + $0x18] sm:$0xff]
  %v41 = vpack.c.bf16 %v38, %v37
  %v42 = vpack.c.bf16 %v40, %v39
  %v43 = vld [vmem:[%s1] sm:$0xf]
  %v44 = vld [vmem:[%s1 + $0x4] sm:$0xf]
  %v45 = vld [vmem:[%s1 + $0x8] sm:$0xf]
  %v46 = vld [vmem:[%s1 + $0xc] sm:$0xf]
  %v51 = vunpack.c.l.b16 %v43
  %v52 = vunpack.c.l.b16 %v44
  %v53 = vunpack.c.l.b16 %v45
  %v54 = vunpack.c.l.b16 %v46
  %v55 = vpack.c.b16 %v52, %v51
  %v56 = vpack.c.b16 %v54, %v53
  %vm59 = vcmask 261120
  %v61 = vsel %vm59, %v41, 0
  %v64 = vsel %vm59, %v42, 0
  %66 = vmatpush.bf16.msra.mxu0 0
  %67 = vmatpush.bf16.msra.mxu0 0
  %68 = vmatpush.bf16.msra.mxu0 0
  %69 = vmatpush.bf16.msra.mxu0 0
  %70 = vmatpush.bf16.msra.mxu0 0
  %71 = vmatpush.bf16.msra.mxu0 0
  %72 = vmatpush.bf16.msra.mxu0 %v56
  %73 = vmatpush.bf16.msra.mxu0 %v55
  %74 = vmatmul.bf16.gmra.mxu0 %v61
  %v75 = vpop.f32.mrf.mxu0
  %v76 = vadd.f32 0.0, %v75
  %v77 = vpop.f32.mrf.mxu0
  %v78 = vadd.f32 0.0, %v77
  %79 = vmatmul.bf16.gmra.mxu0 %v64
  %v80 = vpop.f32.mrf.mxu0
  %v81 = vadd.f32 0.0, %v80
  %v82 = vpop.f32.mrf.mxu0
  %v83 = vadd.f32 0.0, %v82
  %84 = vdwg.mxu0
  %v85 = vadd.f32 %v33, %v76
  %v86 = vadd.f32 %v34, %v78
  %v87 = vadd.f32 %v35, %v81
  %v88 = vadd.f32 %v36, %v83
  %89 = vst.msk [vmem:[#allocation2] sm:$0xff] %vm59, %v85
  %90 = vst.msk [vmem:[#allocation2 + $0x8] sm:$0xff] %vm59, %v86
  %91 = vst.msk [vmem:[#allocation2 + $0x10] sm:$0xff] %vm59, %v87
  %92 = vst.msk [vmem:[#allocation2 + $0x18] sm:$0xff] %vm59, %v88
  // Predicated region
  $region30: #{masked_acoustic_model.17} parent=0 // pred_check
    %p93 = pneg %p24
  $region31: #{masked_acoustic_model.17} parent=0 // pred_check_branch
    %95 = sbr.rel (%p93) target = $region33
  $region32: #{masked_acoustic_model.17} parent=0 // pred_region
    %v96 = vld [vmem:[#allocation2] sm:$0xff]
    %v97 = vld [vmem:[#allocation2 + $0x8] sm:$0xff]
    %v98 = vld [vmem:[#allocation2 + $0x10] sm:$0xff]
    %v99 = vld [vmem:[#allocation2 + $0x18] sm:$0xff]
    %v100 = vld [vmem:[%s2] sm:$0x1]
    %v102 = vperm.slane %v100, 0
    %v104 = vadd.f32 %v96, %v102
    %v105 = vadd.f32 %v97, %v102
    %v106 = vadd.f32 %v98, %v102
    %v107 = vadd.f32 %v99, %v102
    %v108 = vld [vmem:[%s3] sm:$0xff]
    %v109 = vld [vmem:[%s3 + $0x8] sm:$0xff]
    %v110 = vld [vmem:[%s3 + $0x10] sm:$0xff]
    %v111 = vld [vmem:[%s3 + $0x18] sm:$0xff]
    %v112 = vadd.f32 %v104, %v108
    %v113 = vadd.f32 %v105, %v109
    %v114 = vadd.f32 %v106, %v110
    %v115 = vadd.f32 %v107, %v111
    %v116 = vsel %vm59, %v112, 0.0
    %117 = vadd.xlane.f32.xlu0 %v116
    %v118 = vpop.xlane.xlu0 %117
    %v119 = vsel %vm59, %v113, 0.0
    %120 = vadd.xlane.f32.xlu0 %v119
    %v121 = vpop.xlane.xlu0 %120
    %v122 = vsel %vm59, %v114, 0.0
    %123 = vadd.xlane.f32.xlu0 %v122
    %v124 = vpop.xlane.xlu0 %123
    %v125 = vsel %vm59, %v115, 0.0
    %126 = vadd.xlane.f32.xlu0 %v125
    %v127 = vpop.xlane.xlu0 %126
    %v128 = vrcp.pop 32.0
    %v129 = vmul.f32 32.0, %v128
    %v130 = vsub.f32 1.0, %v129
    %v131 = vmul.f32 %v128, %v130
    %v132 = vadd.f32 %v128, %v131
    %vm133 = vweird.f32 %v128
    %v134 = vsel %vm133, %v128, %v132
    %v135 = vmul.f32 %v118, %v134
    %v136 = vmul.f32 %v121, %v134
    %v137 = vmul.f32 %v124, %v134
    %v138 = vmul.f32 %v127, %v134
    %v139 = vsub.f32 %v112, %v135
    %v140 = vsub.f32 %v113, %v136
    %v141 = vsub.f32 %v114, %v137
    %v142 = vsub.f32 %v115, %v138
    %v143 = vmul.f32 %v139, %v139
    %v144 = vmul.f32 %v140, %v140
    %v145 = vmul.f32 %v141, %v141
    %v146 = vmul.f32 %v142, %v142
    %v147 = vsel %vm59, %v143, 0.0
    %148 = vadd.xlane.f32.xlu0 %v147
    %v149 = vpop.xlane.xlu0 %148
    %v150 = vsel %vm59, %v144, 0.0
    %151 = vadd.xlane.f32.xlu0 %v150
    %v152 = vpop.xlane.xlu0 %151
    %v153 = vsel %vm59, %v145, 0.0
    %154 = vadd.xlane.f32.xlu0 %v153
    %v155 = vpop.xlane.xlu0 %154
    %v156 = vsel %vm59, %v146, 0.0
    %157 = vadd.xlane.f32.xlu0 %v156
    %v158 = vpop.xlane.xlu0 %157
    %v159 = vmul.f32 %v149, %v134
    %v160 = vmul.f32 %v152, %v134
    %v161 = vmul.f32 %v155, %v134
    %v162 = vmul.f32 %v158, %v134
    %v163 = vadd.f32 %v159, 1e-12
    %v164 = vadd.f32 %v160, 1e-12
    %v165 = vadd.f32 %v161, 1e-12
    %v166 = vadd.f32 %v162, 1e-12
    %v167 = vrsqrt.pop %v163
    %v168 = vmul.f32 %v167, %v163
    %v169 = vmul.f32 %v168, %v167
    %v170 = vmul.f32 0.5, %v169
    %v171 = vsub.f32 1.5, %v170
    %v172 = vmul.f32 %v167, %v171
    %vm173 = vweird.f32 %v163
    %vm174 = vweird.f32 %v167
    %vm175 = vmor %vm173, %vm174
    %v176 = vsel %vm175, %v167, %v172
    %v177 = vrsqrt.pop %v164
    %v178 = vmul.f32 %v177, %v164
    %v179 = vmul.f32 %v178, %v177
    %v180 = vmul.f32 0.5, %v179
    %v181 = vsub.f32 1.5, %v180
    %v182 = vmul.f32 %v177, %v181
    %vm183 = vweird.f32 %v164
    %vm184 = vweird.f32 %v177
    %vm185 = vmor %vm183, %vm184
    %v186 = vsel %vm185, %v177, %v182
    %v187 = vrsqrt.pop %v165
    %v188 = vmul.f32 %v187, %v165
    %v189 = vmul.f32 %v188, %v187
    %v190 = vmul.f32 0.5, %v189
    %v191 = vsub.f32 1.5, %v190
    %v192 = vmul.f32 %v187, %v191
    %vm193 = vweird.f32 %v165
    %vm194 = vweird.f32 %v187
    %vm195 = vmor %vm193, %vm194
    %v196 = vsel %vm195, %v187, %v192
    %v197 = vrsqrt.pop %v166
    %v198 = vmul.f32 %v197, %v166
    %v199 = vmul.f32 %v198, %v197
    %v200 = vmul.f32 0.5, %v199
    %v201 = vsub.f32 1.5, %v200
    %v202 = vmul.f32 %v197, %v201
    %vm203 = vweird.f32 %v166
    %vm204 = vweird.f32 %v197
    %vm205 = vmor %vm203, %vm204
    %v206 = vsel %vm205, %v197, %v202
    %v207 = vmul.f32 %v139, %v176
    %v208 = vmul.f32 %v140, %v186
    %v209 = vmul.f32 %v141, %v196
    %v210 = vmul.f32 %v142, %v206
    %v211 = vld [vmem:[%s4] sm:$0x1]
    %v213 = vperm.slane %v211, 0
    %v215 = vmul.f32 %v207, %v213
    %v216 = vmul.f32 %v208, %v213
    %v217 = vmul.f32 %v209, %v213
    %v218 = vmul.f32 %v210, %v213
    %v219 = vld [vmem:[%s5] sm:$0x1]
    %v221 = vperm.slane %v219, 0
    %v223 = vadd.f32 %v215, %v221
    %v224 = vadd.f32 %v216, %v221
    %v225 = vadd.f32 %v217, %v221
    %v226 = vadd.f32 %v218, %v221
    %227 = vst.msk [vmem:[%s6] sm:$0xff] %vm59, %v223
    %228 = vst.msk [vmem:[%s6 + $0x8] sm:$0xff] %vm59, %v224
    %229 = vst.msk [vmem:[%s6 + $0x10] sm:$0xff] %vm59, %v225
    %230 = vst.msk [vmem:[%s6 + $0x18] sm:$0xff] %vm59, %v226
  $region33: #{masked_acoustic_model.17} parent=0 // pred_fallthru
    _
  // Predicated region
  $region34: #{masked_acoustic_model.17} parent=0 // pred_check
    _
  $region35: #{masked_acoustic_model.17} parent=0 // pred_check_branch
    %232 = sbr.rel (0) target = $region37
  $region36: #{masked_acoustic_model.17} parent=0 // pred_region
    _
  $region37: #{masked_acoustic_model.17} parent=0 // pred_fallthru
    _
  // Predicated region
  $region38: #{masked_acoustic_model.17} parent=0 // pred_check
    _
  $region39: #{masked_acoustic_model.17} parent=0 // pred_check_branch
    %234 = sbr.rel (0) target = $region41
  $region40: #{masked_acoustic_model.17} parent=0 // pred_region
    _
  $region41: #{masked_acoustic_model.17} parent=0 // pred_fallthru
    _

// kernel: masked_acoustic_model.21
$region0: #{masked_acoustic_model.21}
  #allocation0 [shape = 'u32[]', space=smem, size = 0x4, offset = 0x4, fixed_abs, tag = 'smem constant byte address 0x4 - core index']
  #allocation1 [shape = 'u32[72,128]{1,0:T(1,128)}', space=vmem, size = 0x9000, scoped, tag = 'internal scratch']
  #allocation2 [shape = 'f32[32,64]{1,0:T(8,128)}', space=vmem, size = 0x4000, scoped, tag = 'scratch operand']
  %s0 = inlined_call_operand.vmem [shape: f32[32,32], index: 0, kind: input, shape index: {}]
  %s1 = inlined_call_operand.hbm [shape: bf16[32,64], index: 1, kind: input, shape index: {}]
  %s2 = inlined_call_operand.vmem [shape: f32[1,64], index: 2, kind: input, shape index: {}]
  %s3 = inlined_call_operand.vmem [shape: f32[32,64], index: 3, kind: output, shape index: {}]
  %s4 = sld [smem:[#allocation0]]
  $region34: #{masked_acoustic_model.21} parent=0
    _
  %s6 = ssub.s32 1, %s4
  %s7 = scalar_select 0, %s6, %s4
  $region1: #{masked_acoustic_model.21} parent=0
    #allocation3 [shape = 'u8[8192]{0}', space=vmem, size = 0x2000, scoped, tag = 'input window, operand 1, single buffered']
    #allocation4 [shape = 's32[1]{0}', space=sflag, size = 0x4, scoped, tag = 'scoped memory for masked_acoustic_model.21']
    %8 = vsyncpa [#allocation4], 0
    // Predicated region
    $region2: #{masked_acoustic_model.21} parent=1 // pred_check
      _
    $region3: #{masked_acoustic_model.21} parent=1 // pred_check_branch
      %10 = sbr.rel (0) target = $region5
    $region4: #{masked_acoustic_model.21} parent=1 // pred_region
      _
    $region5: #{masked_acoustic_model.21} parent=1 // pred_fallthru
      _
    // Predicated region
    $region6: #{masked_acoustic_model.21} parent=1 // pred_check
      _
    $region7: #{masked_acoustic_model.21} parent=1 // pred_check_branch
      %12 = sbr.rel (0) target = $region9
    $region8: #{masked_acoustic_model.21} parent=1 // pred_region
      %14 = vsyncadd [#allocation4], 0
      %s15 = sshll.u32 %s1, 4
      %s16 = int_to_ptr.hbm [resolvable:$true] %s15
      %s17 = sshll.u32 [#allocation3], 4
      %s18 = int_to_ptr.vmem [resolvable:$true] %s17
      %23 = dma.hbm_to_vmem [thread:$0]  %s16, 256, %s18, [#allocation4], 64, 64, 4
    $region9: #{masked_acoustic_model.21} parent=1 // pred_fallthru
      _
    // Predicated region
    $region10: #{masked_acoustic_model.21} parent=1 // pred_check
      _
    $region11: #{masked_acoustic_model.21} parent=1 // pred_check_branch
      %25 = sbr.rel (0) target = $region13
    $region12: #{masked_acoustic_model.21} parent=1 // pred_region
      _
    $region13: #{masked_acoustic_model.21} parent=1 // pred_fallthru
      _
    // Predicated region
    $region14: #{masked_acoustic_model.21} parent=1 // pred_check
      _
    $region15: #{masked_acoustic_model.21} parent=1 // pred_check_branch
      %27 = sbr.rel (0) target = $region17
    $region16: #{masked_acoustic_model.21} parent=1 // pred_region
      %29 = dma.done [#allocation4], 256
    $region17: #{masked_acoustic_model.21} parent=1 // pred_fallthru
      _
    %p31 = scmp.eq.s32.totalorder 0, 0
    // Predicated region
    $region18: #{masked_acoustic_model.21} parent=1 // pred_check
      %p32 = pneg %p31
    $region19: #{masked_acoustic_model.21} parent=1 // pred_check_branch
      %34 = sbr.rel (%p32) target = $region21
    $region20: #{masked_acoustic_model.21} parent=1 // pred_region
      %vm35 = vcmask 523264
      %36 = vst.msk [vmem:[#allocation2] sm:$0xff] %vm35, 0.0
      %37 = vst.msk [vmem:[#allocation2 + $0x8] sm:$0xff] %vm35, 0.0
      %38 = vst.msk [vmem:[#allocation2 + $0x10] sm:$0xff] %vm35, 0.0
      %39 = vst.msk [vmem:[#allocation2 + $0x18] sm:$0xff] %vm35, 0.0
    $region21: #{masked_acoustic_model.21} parent=1 // pred_fallthru
      _
    %v40 = vld [vmem:[#allocation2] sm:$0xff]
    %v41 = vld [vmem:[#allocation2 + $0x8] sm:$0xff]
    %v42 = vld [vmem:[#allocation2 + $0x10] sm:$0xff]
    %v43 = vld [vmem:[#allocation2 + $0x18] sm:$0xff]
    %v44 = vld [vmem:[%s0] sm:$0xff]
    %v45 = vld [vmem:[%s0 + $0x8] sm:$0xff]
    %v46 = vld [vmem:[%s0 + $0x10] sm:$0xff]
    %v47 = vld [vmem:[%s0 + $0x18] sm:$0xff]
    %v48 = vpack.c.bf16 %v45, %v44
    %v49 = vpack.c.bf16 %v47, %v46
    %v50 = vld [vmem:[#allocation3] sm:$0xf]
    %v51 = vld [vmem:[#allocation3 + $0x4] sm:$0xf]
    %v52 = vld [vmem:[#allocation3 + $0x8] sm:$0xf]
    %v53 = vld [vmem:[#allocation3 + $0xc] sm:$0xf]
    %v58 = vunpack.c.l.b16 %v50
    %v59 = vunpack.c.l.b16 %v51
    %v60 = vunpack.c.l.b16 %v52
    %v61 = vunpack.c.l.b16 %v53
    %v62 = vpack.c.b16 %v59, %v58
    %v63 = vpack.c.b16 %v61, %v60
    %vm66 = vcmask 261120
    %v68 = vsel %vm66, %v48, 0
    %v71 = vsel %vm66, %v49, 0
    %73 = vmatpush.bf16.msra.mxu0 0
    %74 = vmatpush.bf16.msra.mxu0 0
    %75 = vmatpush.bf16.msra.mxu0 0
    %76 = vmatpush.bf16.msra.mxu0 0
    %77 = vmatpush.bf16.msra.mxu0 0
    %78 = vmatpush.bf16.msra.mxu0 0
    %79 = vmatpush.bf16.msra.mxu0 %v63
    %80 = vmatpush.bf16.msra.mxu0 %v62
    %81 = vmatmul.bf16.gmra.mxu0 %v68
    %v82 = vpop.f32.mrf.mxu0
    %v83 = vadd.f32 0.0, %v82
    %v84 = vpop.f32.mrf.mxu0
    %v85 = vadd.f32 0.0, %v84
    %86 = vmatmul.bf16.gmra.mxu0 %v71
    %v87 = vpop.f32.mrf.mxu0
    %v88 = vadd.f32 0.0, %v87
    %v89 = vpop.f32.mrf.mxu0
    %v90 = vadd.f32 0.0, %v89
    %91 = vdwg.mxu0
    %v92 = vadd.f32 %v40, %v83
    %v93 = vadd.f32 %v41, %v85
    %v94 = vadd.f32 %v42, %v88
    %v95 = vadd.f32 %v43, %v90
    %vm96 = vcmask 523264
    %97 = vst.msk [vmem:[#allocation2] sm:$0xff] %vm96, %v92
    %98 = vst.msk [vmem:[#allocation2 + $0x8] sm:$0xff] %vm96, %v93
    %99 = vst.msk [vmem:[#allocation2 + $0x10] sm:$0xff] %vm96, %v94
    %100 = vst.msk [vmem:[#allocation2 + $0x18] sm:$0xff] %vm96, %v95
    // Predicated region
    $region22: #{masked_acoustic_model.21} parent=1 // pred_check
      %p101 = pneg %p31
    $region23: #{masked_acoustic_model.21} parent=1 // pred_check_branch
      %103 = sbr.rel (%p101) target = $region25
    $region24: #{masked_acoustic_model.21} parent=1 // pred_region
      %v104 = vld [vmem:[#allocation2] sm:$0xff]
      %v105 = vld [vmem:[#allocation2 + $0x8] sm:$0xff]
      %v106 = vld [vmem:[#allocation2 + $0x10] sm:$0xff]
      %v107 = vld [vmem:[#allocation2 + $0x18] sm:$0xff]
      %v108 = vld [vmem:[%s2] sm:$0x1]
      %v110 = vperm.slane %v108, 0
      %v112 = vadd.f32 %v104, %v110
      %v113 = vadd.f32 %v105, %v110
      %v114 = vadd.f32 %v106, %v110
      %v115 = vadd.f32 %v107, %v110
      %v116 = vmul.f32 %v112, 0.5
      %v117 = vmul.f32 %v113, 0.5
      %v118 = vmul.f32 %v114, 0.5
      %v119 = vmul.f32 %v115, 0.5
      %v120 = vmul.f32 %v112, 0.044715
      %v121 = vmul.f32 %v113, 0.044715
      %v122 = vmul.f32 %v114, 0.044715
      %v123 = vmul.f32 %v115, 0.044715
      %v124 = vmul.f32 %v120, %v112
      %v125 = vmul.f32 %v121, %v113
      %v126 = vmul.f32 %v122, %v114
      %v127 = vmul.f32 %v123, %v115
      %v128 = vmul.f32 %v124, %v112
      %v129 = vmul.f32 %v125, %v113
      %v130 = vmul.f32 %v126, %v114
      %v131 = vmul.f32 %v127, %v115
      %v132 = vadd.f32 %v112, %v128
      %v133 = vadd.f32 %v113, %v129
      %v134 = vadd.f32 %v114, %v130
      %v135 = vadd.f32 %v115, %v131
      %v136 = vmul.f32 %v132, 0.7978846
      %v137 = vmul.f32 %v133, 0.7978846
      %v138 = vmul.f32 %v134, 0.7978846
      %v139 = vmul.f32 %v135, 0.7978846
      %v140 = vtanh.pop %v136
      %v141 = vtanh.pop %v137
      %v142 = vtanh.pop %v138
      %v143 = vtanh.pop %v139
      %v144 = vadd.f32 %v140, 1.0
      %v145 = vadd.f32 %v141, 1.0
      %v146 = vadd.f32 %v142, 1.0
      %v147 = vadd.f32 %v143, 1.0
      %v148 = vmul.f32 %v116, %v144
      %v149 = vmul.f32 %v117, %v145
      %v150 = vmul.f32 %v118, %v146
      %v151 = vmul.f32 %v119, %v147
      %152 = vst.msk [vmem:[%s3] sm:$0xff] %vm96, %v148
      %153 = vst.msk [vmem:[%s3 + $0x8] sm:$0xff] %vm96, %v149
      %154 = vst.msk [vmem:[%s3 + $0x10] sm:$0xff] %vm96, %v150
      %155 = vst.msk [vmem:[%s3 + $0x18] sm:$0xff] %vm96, %v151
    $region25: #{masked_acoustic_model.21} parent=1 // pred_fallthru
      _
    // Predicated region
    $region26: #{masked_acoustic_model.21} parent=1 // pred_check
      _
    $region27: #{masked_acoustic_model.21} parent=1 // pred_check_branch
      %157 = sbr.rel (0) target = $region29
    $region28: #{masked_acoustic_model.21} parent=1 // pred_region
      _
    $region29: #{masked_acoustic_model.21} parent=1 // pred_fallthru
      _
    // Predicated region
    $region30: #{masked_acoustic_model.21} parent=1 // pred_check
      _
    $region31: #{masked_acoustic_model.21} parent=1 // pred_check_branch
      %159 = sbr.rel (0) target = $region33
    $region32: #{masked_acoustic_model.21} parent=1 // pred_region
      _
    $region33: #{masked_acoustic_model.21} parent=1 // pred_fallthru
      _
    %160 = vsyncpa [#allocation4], 1

// kernel: masked_acoustic_model.19
$region0: #{masked_acoustic_model.19}
  #allocation0 [shape = 'u32[]', space=smem, size = 0x4, offset = 0x4, fixed_abs, tag = 'smem constant byte address 0x4 - core index']
  #allocation1 [shape = 'u32[72,128]{1,0:T(1,128)}', space=vmem, size = 0x9000, scoped, tag = 'internal scratch']
  %s0 = inlined_call_operand.vmem [shape: f32[32,96], index: 0, kind: input, shape index: {}]
  %s1 = inlined_call_operand.vmem [shape: f32[4,1,8], index: 1, kind: input, shape index: {}]
  %s2 = inlined_call_operand.vmem [shape: f32[32,32], index: 2, kind: output, shape index: {}]
  %s3 = sld [smem:[#allocation0]]
  $region41: #{masked_acoustic_model.19} parent=0
    _
  %s5 = ssub.s32 1, %s3
  %s6 = scalar_select 0, %s5, %s3
  loop: start=0, step=1, limit=6
  $region2: #{masked_acoustic_model.19} parent=0 // loop_pre_header
    _
  $region3: #{masked_acoustic_model.19} parent=0 // loop_header
    %s8 = sphi 0, %s12
    %p9 = scmp.ge.s32.totalorder %s8, 6
    %s18 = sphi 0, %s20
    %s21 = sphi 0, %s18
    %s22 = sphi 0, %s21
    %s38 = sphi 0, %s22
    %s44 = sphi 0, %s46
    %s47 = sphi 0, %s44
    %s48 = sphi 0, %s47
    %s64 = sphi 0, %s48
    %s70 = sphi 0, %s72
    %s73 = sphi 0, %s70
    %s74 = sphi 0, %s73
    %s90 = sphi 0, %s74
  $region4: #{masked_acoustic_model.19} parent=0 // loop_header_branch
    %11 = sbr.rel (%p9) target = $region8
  $region5: #{masked_acoustic_model.19} parent=0 // loop_body
    %s13 = ssub.s32 %s8, 1
    %s14 = ssub.s32 %s8, 2
    %s15 = sadd.s32 %s8, 1
    %s16 = ssub.s32 %s8, %s15
    %p17 = scmp.eq.s32.totalorder %s16, 0
    %s19 = sadd.s32 %s18, 1
    %s20 = scalar_select %p17, %s18, %s19
    %p23 = pneg %p17
    %p24 = scmp.eq.s32.totalorder %s8, 3
    %p25 = por %p23, %p24
    %p26 = scmp.ne.s32.totalorder %s18, %s21
    %p27 = scmp.eq.s32.totalorder %s8, 0
    %p28 = por %p26, %p27
    %p29 = scmp.ne.s32.totalorder %s18, %s21
    %p30 = scmp.eq.s32.totalorder %s13, 3
    %p31 = por %p29, %p30
    %p32 = scmp.ne.s32.totalorder %s21, %s22
    %p33 = scmp.eq.s32.totalorder %s13, 0
    %p34 = por %p32, %p33
    %p35 = scmp.ne.s32.totalorder %s21, %s22
    %p36 = scmp.eq.s32.totalorder %s14, 3
    %p37 = por %p35, %p36
    %p39 = scmp.ne.s32.totalorder %s22, %s38
    %p40 = scmp.eq.s32.totalorder %s14, 0
    %p41 = por %p39, %p40
    %s42 = ssub.s32 %s8, %s15
    %p43 = scmp.eq.s32.totalorder %s42, 0
    %s45 = sadd.s32 %s44, 1
    %s46 = scalar_select %p43, %s44, %s45
    %p49 = pneg %p43
    %p50 = scmp.eq.s32.totalorder %s8, 3
    %p51 = por %p49, %p50
    %p52 = scmp.ne.s32.totalorder %s44, %s47
    %p53 = scmp.eq.s32.totalorder %s8, 0
    %p54 = por %p52, %p53
    %p55 = scmp.ne.s32.totalorder %s44, %s47
    %p56 = scmp.eq.s32.totalorder %s13, 3
    %p57 = por %p55, %p56
    %p58 = scmp.ne.s32.totalorder %s47, %s48
    %p59 = scmp.eq.s32.totalorder %s13, 0
    %p60 = por %p58, %p59
    %p61 = scmp.ne.s32.totalorder %s47, %s48
    %p62 = scmp.eq.s32.totalorder %s14, 3
    %p63 = por %p61, %p62
    %p65 = scmp.ne.s32.totalorder %s48, %s64
    %p66 = scmp.eq.s32.totalorder %s14, 0
    %p67 = por %p65, %p66
    %s68 = ssub.s32 %s8, %s15
    %p69 = scmp.eq.s32.totalorder %s68, 0
    %s71 = sadd.s32 %s70, 1
    %s72 = scalar_select %p69, %s70, %s71
    %p75 = pneg %p69
    %p76 = scmp.eq.s32.totalorder %s8, 3
    %p77 = por %p75, %p76
    %p78 = scmp.ne.s32.totalorder %s70, %s73
    %p79 = scmp.eq.s32.totalorder %s8, 0
    %p80 = por %p78, %p79
    %p81 = scmp.ne.s32.totalorder %s70, %s73
    %p82 = scmp.eq.s32.totalorder %s13, 3
    %p83 = por %p81, %p82
    %p84 = scmp.ne.s32.totalorder %s73, %s74
    %p85 = scmp.eq.s32.totalorder %s13, 0
    %p86 = por %p84, %p85
    %p87 = scmp.ne.s32.totalorder %s73, %s74
    %p88 = scmp.eq.s32.totalorder %s14, 3
    %p89 = por %p87, %p88
    %p91 = scmp.ne.s32.totalorder %s74, %s90
    %p92 = scmp.eq.s32.totalorder %s14, 0
    %p93 = por %p91, %p92
    %p94 = scmp.le.s32.totalorder 1, %s8
    %p95 = scmp.lt.s32.totalorder %s8, 5
    %p96 = pnand %p94, %p95
    %p97 = pneg %p96
    // Predicated region
    $region9: #{masked_acoustic_model.19} parent=5 // pred_check
      _
    $region10: #{masked_acoustic_model.19} parent=5 // pred_check_branch
      %99 = sbr.rel (%p96) target = $region12
    $region11: #{masked_acoustic_model.19} parent=5 // pred_region
      %s100 = ssub.s32 %s8, 1
    $region12: #{masked_acoustic_model.19} parent=5 // pred_fallthru
      _
    %p101 = scmp.lt.s32.totalorder %s8, 4
    // Predicated region
    $region13: #{masked_acoustic_model.19} parent=5 // pred_check
      %p102 = pneg %p101
    $region14: #{masked_acoustic_model.19} parent=5 // pred_check_branch
      %104 = sbr.rel (%p102) target = $region16
    $region15: #{masked_acoustic_model.19} parent=5 // pred_region
      // Predicated region
      $region17: #{masked_acoustic_model.19} parent=15 // pred_check
        %p105 = pneg %p28
      $region18: #{masked_acoustic_model.19} parent=15 // pred_check_branch
        %107 = sbr.rel (%p105) target = $region20
      $region19: #{masked_acoustic_model.19} parent=15 // pred_region
        %p108 = scmp.lt.s32.totalorder %s8, 3
        %s109 = scalar_select %p108, %s8, 3
        %s110 = smul.addr %s109, 8
        %s111 = scalar_lea.vmem %s0, %s110
      $region20: #{masked_acoustic_model.19} parent=15 // pred_fallthru
        _
      // Predicated region
      $region21: #{masked_acoustic_model.19} parent=15 // pred_check
        %p112 = pneg %p54
      $region22: #{masked_acoustic_model.19} parent=15 // pred_check_branch
        %114 = sbr.rel (%p112) target = $region24
      $region23: #{masked_acoustic_model.19} parent=15 // pred_region
        %p115 = scmp.lt.s32.totalorder %s8, 3
        %s116 = scalar_select %p115, %s8, 3
        %s117 = scalar_lea.vmem %s1, %s116
      $region24: #{masked_acoustic_model.19} parent=15 // pred_fallthru
        _
    $region16: #{masked_acoustic_model.19} parent=5 // pred_fallthru
      _
    %p118 = scmp.le.s32.totalorder 1, %s8
    %p119 = scmp.lt.s32.totalorder %s8, 5
    %p120 = pnand %p118, %p119
    %p121 = pneg %p120
    // Predicated region
    $region25: #{masked_acoustic_model.19} parent=5 // pred_check
      _
    $region26: #{masked_acoustic_model.19} parent=5 // pred_check_branch
      %123 = sbr.rel (%p120) target = $region28
    $region27: #{masked_acoustic_model.19} parent=5 // pred_region
      %s124 = ssub.s32 %s8, 1
      %p125 = scmp.lt.s32.totalorder %s13, 3
      %s126 = scalar_select %p125, %s13, 3
      %s127 = smul.addr %s126, 8
      %s128 = scalar_lea.vmem %s0, %s127
      %p129 = pneg %p34
      %p130 = pneg %p31
      %p131 = scmp.lt.s32.totalorder %s13, 3
      %s132 = scalar_select %p131, %s13, 3
      %s133 = scalar_lea.vmem %s1, %s132
      %p134 = pneg %p60
      %p135 = pneg %p57
      %p136 = pneg %p86
      %p137 = pneg %p83
      %p138 = scmp.lt.s32.totalorder %s13, 3
      %s139 = scalar_select %p138, %s13, 3
      %s140 = smul.addr %s139, 8
      %s141 = scalar_lea.vmem %s2, %s140
      %p142 = scmp.lt.s32.totalorder %s13, 3
      %s143 = scalar_select %p142, %s13, 3
      %s144 = smul.addr %s143, 8
      %s145 = scalar_lea.vmem %s0, %s144
      %p146 = scmp.lt.s32.totalorder %s13, 3
      %s147 = scalar_select %p146, %s13, 3
      %s148 = scalar_lea.vmem %s1, %s147
      %p149 = scmp.lt.s32.totalorder %s13, 3
      %s150 = scalar_select %p149, %s13, 3
      %s151 = smul.addr %s150, 8
      %s152 = scalar_lea.vmem %s2, %s151
      %v154 = vld [vmem:[%s145] sm:$0xff]
      %v155 = vld [vmem:[%s148] sm:$0x1]
      %v156 = vmul.f32 %v154, 0.35355338
      %v157 = vpack.c.bf16 %v156, %v156
      %v158 = vpack.c.bf16 %v154, %v154
      %v160 = vperm.slane %v155, 0
      %v163 = vunpack.c.l.b16 %v158
      %v164 = vpack.c.b16 %v163, %v163
      %165 = vrot.lane.b32.xlu0 %v164, 96
      %v166 = vpop.permute.xlu0 %165
      %vm167 = vcmask 64512
      %v169 = vsel %vm167, %v157, 0
      %v172 = vsel %vm167, %v166, 0
      %174 = vmatpush.bf16.xpose.msra.mxu0 0
      %175 = vmatpush.bf16.xpose.msra.mxu0 0
      %176 = vmatpush.bf16.xpose.msra.mxu0 0
      %177 = vmatpush.bf16.xpose.msra.mxu0 0
      %178 = vmatpush.bf16.xpose.msra.mxu0 0
      %179 = vmatpush.bf16.xpose.msra.mxu0 0
      %180 = vmatpush.bf16.xpose.msra.mxu0 0
      %181 = vmatpush.bf16.xpose.msra.mxu0 %v172
      %182 = vmatmul.bf16.gmra.mxu0 %v169
      %v183 = vpop.f32.mrf.mxu0
      %v184 = vadd.f32 %v160, %v183
      %v185 = vpop.f32.mrf.mxu0
      %186 = vdwg.mxu0
      %v187 = vsel %vm167, %v184, -inf
      %188 = vmax.xlane.f32.xlu0 %v187
      %v189 = vpop.xlane.xlu0 %188
      %v190 = vsub.f32 %v184, %v189
      %v191 = vmul.f32 %v190, 1.442695
      %v192 = vpow.pop %v191
      %v193 = vsel %vm167, %v192, 0.0
      %194 = vadd.xlane.f32.xlu0 %v193
      %v195 = vpop.xlane.xlu0 %194
      %v196 = vrcp.pop %v195
      %v197 = vmul.f32 %v192, %v196
      %v198 = vpack.c.bf16 %v197, %v197
      %199 = vrot.lane.b32.xlu0 %v164, 64
      %v200 = vpop.permute.xlu0 %199
      %v202 = vsel %vm167, %v198, 0
      %vm204 = vcmask 1043456
      %v206 = vsel %vm204, %v200, 0
      %208 = vmatpush.bf16.msra.mxu0 0
      %209 = vmatpush.bf16.msra.mxu0 0
      %210 = vmatpush.bf16.msra.mxu0 0
      %211 = vmatpush.bf16.msra.mxu0 0
      %212 = vmatpush.bf16.msra.mxu0 0
      %213 = vmatpush.bf16.msra.mxu0 0
      %214 = vmatpush.bf16.msra.mxu0 0
      %215 = vmatpush.bf16.msra.mxu0 %v206
      %216 = vmatmul.bf16.gmra.mxu0 %v202
      %v217 = vpop.f32.mrf.mxu0
      %v218 = vadd.f32 0.0, %v217
      %v219 = vpop.f32.mrf.mxu0
      %220 = vdwg.mxu0
      %v222 = vunpack.c.l.b16 %v157
      %v223 = vpack.c.b16 %v222, %v222
      %224 = vrot.lane.b32.xlu0 %v223, 120
      %v225 = vpop.permute.xlu0 %224
      %226 = vrot.lane.b32.xlu0 %v164, 88
      %v227 = vpop.permute.xlu0 %226
      %v229 = vsel %vm167, %v225, 0
      %v232 = vsel %vm167, %v227, 0
      %234 = vmatpush.bf16.xpose.msra.mxu0 0
      %235 = vmatpush.bf16.xpose.msra.mxu0 0
      %236 = vmatpush.bf16.xpose.msra.mxu0 0
      %237 = vmatpush.bf16.xpose.msra.mxu0 0
      %238 = vmatpush.bf16.xpose.msra.mxu0 0
      %239 = vmatpush.bf16.xpose.msra.mxu0 0
      %240 = vmatpush.bf16.xpose.msra.mxu0 0
      %241 = vmatpush.bf16.xpose.msra.mxu0 %v232
      %242 = vmatmul.bf16.gmra.mxu0 %v229
      %v243 = vpop.f32.mrf.mxu0
      %v244 = vadd.f32 %v160, %v243
      %v245 = vpop.f32.mrf.mxu0
      %246 = vdwg.mxu0
      %v247 = vsel %vm167, %v244, -inf
      %248 = vmax.xlane.f32.xlu0 %v247
      %v249 = vpop.xlane.xlu0 %248
      %v250 = vsub.f32 %v244, %v249
      %v251 = vmul.f32 %v250, 1.442695
      %v252 = vpow.pop %v251
      %v253 = vsel %vm167, %v252, 0.0
      %254 = vadd.xlane.f32.xlu0 %v253
      %v255 = vpop.xlane.xlu0 %254
      %v256 = vrcp.pop %v255
      %v257 = vmul.f32 %v252, %v256
      %v258 = vpack.c.bf16 %v257, %v257
      %259 = vrot.lane.b32.xlu0 %v164, 56
      %v260 = vpop.permute.xlu0 %259
      %v262 = vsel %vm167, %v258, 0
      %v265 = vsel %vm204, %v260, 0
      %267 = vmatpush.bf16.msra.mxu0 0
      %268 = vmatpush.bf16.msra.mxu0 0
      %269 = vmatpush.bf16.msra.mxu0 0
      %270 = vmatpush.bf16.msra.mxu0 0
      %271 = vmatpush.bf16.msra.mxu0 0
      %272 = vmatpush.bf16.msra.mxu0 0
      %273 = vmatpush.bf16.msra.mxu0 0
      %274 = vmatpush.bf16.msra.mxu0 %v265
      %275 = vmatmul.bf16.gmra.mxu0 %v262
      %v276 = vpop.f32.mrf.mxu0
      %v277 = vadd.f32 0.0, %v276
      %v278 = vpop.f32.mrf.mxu0
      %279 = vdwg.mxu0
      %280 = vrot.lane.b32.xlu0 %v223, 112
      %v281 = vpop.permute.xlu0 %280
      %282 = vrot.lane.b32.xlu0 %v164, 80
      %v283 = vpop.permute.xlu0 %282
      %v285 = vsel %vm167, %v281, 0
      %v288 = vsel %vm167, %v283, 0
      %290 = vmatpush.bf16.xpose.msra.mxu0 0
      %291 = vmatpush.bf16.xpose.msra.mxu0 0
      %292 = vmatpush.bf16.xpose.msra.mxu0 0
      %293 = vmatpush.bf16.xpose.msra.mxu0 0
      %294 = vmatpush.bf16.xpose.msra.mxu0 0
      %295 = vmatpush.bf16.xpose.msra.mxu0 0
      %296 = vmatpush.bf16.xpose.msra.mxu0 0
      %297 = vmatpush.bf16.xpose.msra.mxu0 %v288
      %298 = vmatmul.bf16.gmra.mxu0 %v285
      %v299 = vpop.f32.mrf.mxu0
      %v300 = vadd.f32 %v160, %v299
      %v301 = vpop.f32.mrf.mxu0
      %302 = vdwg.mxu0
      %v303 = vsel %vm167, %v300, -inf
      %304 = vmax.xlane.f32.xlu0 %v303
      %v305 = vpop.xlane.xlu0 %304
      %v306 = vsub.f32 %v300, %v305
      %v307 = vmul.f32 %v306, 1.442695
      %v308 = vpow.pop %v307
      %v309 = vsel %vm167, %v308, 0.0
      %310 = vadd.xlane.f32.xlu0 %v309
      %v311 = vpop.xlane.xlu0 %310
      %v312 = vrcp.pop %v311
      %v313 = vmul.f32 %v308, %v312
      %v314 = vpack.c.bf16 %v313, %v313
      %315 = vrot.lane.b32.xlu0 %v164, 48
      %v316 = vpop.permute.xlu0 %315
      %v318 = vsel %vm167, %v314, 0
      %v321 = vsel %vm204, %v316, 0
      %323 = vmatpush.bf16.msra.mxu0 0
      %324 = vmatpush.bf16.msra.mxu0 0
      %325 = vmatpush.bf16.msra.mxu0 0
      %326 = vmatpush.bf16.msra.mxu0 0
      %327 = vmatpush.bf16.msra.mxu0 0
      %328 = vmatpush.bf16.msra.mxu0 0
      %329 = vmatpush.bf16.msra.mxu0 0
      %330 = vmatpush.bf16.msra.mxu0 %v321
      %331 = vmatmul.bf16.gmra.mxu0 %v318
      %v332 = vpop.f32.mrf.mxu0
      %v333 = vadd.f32 0.0, %v332
      %v334 = vpop.f32.mrf.mxu0
      %335 = vdwg.mxu0
      %336 = vrot.lane.b32.xlu0 %v223, 104
      %v337 = vpop.permute.xlu0 %336
      %338 = vrot.lane.b32.xlu0 %v164, 72
      %v339 = vpop.permute.xlu0 %338
      %v341 = vsel %vm167, %v337, 0
      %v344 = vsel %vm167, %v339, 0
      %346 = vmatpush.bf16.xpose.msra.mxu0 0
      %347 = vmatpush.bf16.xpose.msra.mxu0 0
      %348 = vmatpush.bf16.xpose.msra.mxu0 0
      %349 = vmatpush.bf16.xpose.msra.mxu0 0
      %350 = vmatpush.bf16.xpose.msra.mxu0 0
      %351 = vmatpush.bf16.xpose.msra.mxu0 0
      %352 = vmatpush.bf16.xpose.msra.mxu0 0
      %353 = vmatpush.bf16.xpose.msra.mxu0 %v344
      %354 = vmatmul.bf16.gmra.mxu0 %v341
      %v355 = vpop.f32.mrf.mxu0
      %v356 = vadd.f32 %v160, %v355
      %v357 = vpop.f32.mrf.mxu0
      %358 = vdwg.mxu0
      %v359 = vsel %vm167, %v356, -inf
      %360 = vmax.xlane.f32.xlu0 %v359
      %v361 = vpop.xlane.xlu0 %360
      %v362 = vsub.f32 %v356, %v361
      %v363 = vmul.f32 %v362, 1.442695
      %v364 = vpow.pop %v363
      %v365 = vsel %vm167, %v364, 0.0
      %366 = vadd.xlane.f32.xlu0 %v365
      %v367 = vpop.xlane.xlu0 %366
      %v368 = vrcp.pop %v367
      %v369 = vmul.f32 %v364, %v368
      %v370 = vpack.c.bf16 %v369, %v369
      %371 = vrot.lane.b32.xlu0 %v164, 40
      %v372 = vpop.permute.xlu0 %371
      %v374 = vsel %vm167, %v370, 0
      %v377 = vsel %vm204, %v372, 0
      %379 = vmatpush.bf16.msra.mxu0 0
      %380 = vmatpush.bf16.msra.mxu0 0
      %381 = vmatpush.bf16.msra.mxu0 0
      %382 = vmatpush.bf16.msra.mxu0 0
      %383 = vmatpush.bf16.msra.mxu0 0
      %384 = vmatpush.bf16.msra.mxu0 0
      %385 = vmatpush.bf16.msra.mxu0 0
      %386 = vmatpush.bf16.msra.mxu0 %v377
      %387 = vmatmul.bf16.gmra.mxu0 %v374
      %v388 = vpop.f32.mrf.mxu0
      %v389 = vadd.f32 0.0, %v388
      %v390 = vpop.f32.mrf.mxu0
      %391 = vdwg.mxu0
      %393 = vrot.lane.b32.xlu0 %v277, 8
      %v394 = vpop.permute.xlu0 %393
      %397 = vrot.lane.b32.xlu0 %v333, 16
      %v398 = vpop.permute.xlu0 %397
      %401 = vrot.lane.b32.xlu0 %v389, 24
      %v402 = vpop.permute.xlu0 %401
      %v404 = vsel %vm167, %v218, %v394
      %vm405 = vcmask 130048
      %v406 = vsel %vm405, %v404, %v398
      %vm407 = vcmask 195584
      %v408 = vsel %vm407, %v406, %v402
      %vm409 = vcmask 261120
      %410 = vst.msk [vmem:[%s152] sm:$0xff] %vm409, %v408
      %p411 = scmp.lt.s32.totalorder %s13, 3
      %s412 = scalar_select %p411, %s13, 3
      %s413 = smul.addr %s412, 8
      %s414 = scalar_lea.vmem %s2, %s413
      // Predicated region
      $region29: #{masked_acoustic_model.19} parent=27 // pred_check
        %p415 = pneg %p83
      $region30: #{masked_acoustic_model.19} parent=27 // pred_check_branch
        %417 = sbr.rel (%p415) target = $region32
      $region31: #{masked_acoustic_model.19} parent=27 // pred_region
        _
      $region32: #{masked_acoustic_model.19} parent=27 // pred_fallthru
        _
    $region28: #{masked_acoustic_model.19} parent=5 // pred_fallthru
      _
    %p418 = scmp.le.s32.totalorder 2, %s8
    // Predicated region
    $region33: #{masked_acoustic_model.19} parent=5 // pred_check
      %p419 = pneg %p418
    $region34: #{masked_acoustic_model.19} parent=5 // pred_check_branch
      %421 = sbr.rel (%p419) target = $region36
    $region35: #{masked_acoustic_model.19} parent=5 // pred_region
      %s422 = ssub.s32 %s8, 2
      // Predicated region
      $region37: #{masked_acoustic_model.19} parent=35 // pred_check
        %p423 = pneg %p89
      $region38: #{masked_acoustic_model.19} parent=35 // pred_check_branch
        %425 = sbr.rel (%p423) target = $region40
      $region39: #{masked_acoustic_model.19} parent=35 // pred_region
        %p426 = scmp.lt.s32.totalorder %s14, 3
        %s427 = scalar_select %p426, %s14, 3
        %s428 = smul.addr %s427, 8
        %s429 = scalar_lea.vmem %s2, %s428
      $region40: #{masked_acoustic_model.19} parent=35 // pred_fallthru
        _
    $region36: #{masked_acoustic_model.19} parent=5 // pred_fallthru
      _
  $region6: #{masked_acoustic_model.19} parent=0 // loop_footer
    %s12 = sadd.s32 1, %s8
  $region7: #{masked_acoustic_model.19} parent=0 // loop_footer_branch
    %7 = sbr.rel target = $region3
  $region8: #{masked_acoustic_model.19} parent=0 // loop_exit
    _

// kernel: masked_acoustic_model.29
$region0: #{masked_acoustic_model.29}
  #allocation0 [shape = 'u32[]', space=smem, size = 0x4, offset = 0x4, fixed_abs, tag = 'smem constant byte address 0x4 - core index']
  #allocation1 [shape = 'u32[72,128]{1,0:T(1,128)}', space=vmem, size = 0x9000, scoped, tag = 'internal scratch']
  #allocation2 [shape = 'f32[16,32]{1,0:T(8,128)}', space=vmem, size = 0x2000, scoped, tag = 'scratch operand']
  %s0 = inlined_call_operand.vmem [shape: f32[16,32], index: 0, kind: input, shape index: {}]
  %s1 = inlined_call_operand.vmem [shape: bf16[32,32], index: 1, kind: input, shape index: {}]
  %s2 = inlined_call_operand.vmem [shape: f32[1,32], index: 2, kind: input, shape index: {}]
  %s3 = inlined_call_operand.vmem [shape: f32[16,32], index: 3, kind: output, shape index: {}]
  %s4 = sld [smem:[#allocation0]]
  $region30: #{masked_acoustic_model.29} parent=0
    _
  %s6 = ssub.s32 1, %s4
  %s7 = scalar_select 0, %s6, %s4
  // Predicated region
  $region2: #{masked_acoustic_model.29} parent=0 // pred_check
    _
  $region3: #{masked_acoustic_model.29} parent=0 // pred_check_branch
    %9 = sbr.rel (0) target = $region5
  $region4: #{masked_acoustic_model.29} parent=0 // pred_region
    _
  $region5: #{masked_acoustic_model.29} parent=0 // pred_fallthru
    _
  // Predicated region
  $region6: #{masked_acoustic_model.29} parent=0 // pred_check
    _
  $region7: #{masked_acoustic_model.29} parent=0 // pred_check_branch
    %11 = sbr.rel (0) target = $region9
  $region8: #{masked_acoustic_model.29} parent=0 // pred_region
    _
  $region9: #{masked_acoustic_model.29} parent=0 // pred_fallthru
    _
  // Predicated region
  $region10: #{masked_acoustic_model.29} parent=0 // pred_check
    _
  $region11: #{masked_acoustic_model.29} parent=0 // pred_check_branch
    %13 = sbr.rel (0) target = $region13
  $region12: #{masked_acoustic_model.29} parent=0 // pred_region
    _
  $region13: #{masked_acoustic_model.29} parent=0 // pred_fallthru
    _
  %p15 = scmp.eq.s32.totalorder 0, 0
  // Predicated region
  $region14: #{masked_acoustic_model.29} parent=0 // pred_check
    %p16 = pneg %p15
  $region15: #{masked_acoustic_model.29} parent=0 // pred_check_branch
    %18 = sbr.rel (%p16) target = $region17
  $region16: #{masked_acoustic_model.29} parent=0 // pred_region
    %vm19 = vcmask 261120
    %20 = vst.msk [vmem:[#allocation2] sm:$0xff] %vm19, 0.0
    %21 = vst.msk [vmem:[#allocation2 + $0x8] sm:$0xff] %vm19, 0.0
  $region17: #{masked_acoustic_model.29} parent=0 // pred_fallthru
    _
  %v22 = vld [vmem:[#allocation2] sm:$0xff]
  %v23 = vld [vmem:[#allocation2 + $0x8] sm:$0xff]
  %v24 = vld [vmem:[%s0] sm:$0xff]
  %v25 = vld [vmem:[%s0 + $0x8] sm:$0xff]
  %v26 = vpack.c.bf16 %v25, %v24
  %v27 = vld [vmem:[%s1] sm:$0xf]
  %v28 = vld [vmem:[%s1 + $0x4] sm:$0xf]
  %v29 = vld [vmem:[%s1 + $0x8] sm:$0xf]
  %v30 = vld [vmem:[%s1 + $0xc] sm:$0xf]
  %v35 = vunpack.c.l.b16 %v27
  %v36 = vunpack.c.l.b16 %v28
  %v37 = vunpack.c.l.b16 %v29
  %v38 = vunpack.c.l.b16 %v30
  %v39 = vpack.c.b16 %v36, %v35
  %v40 = vpack.c.b16 %v38, %v37
  %vm43 = vcmask 261120
  %v45 = vsel %vm43, %v26, 0
  %47 = vmatpush.bf16.msra.mxu0 0
  %48 = vmatpush.bf16.msra.mxu0 0
  %49 = vmatpush.bf16.msra.mxu0 0
  %50 = vmatpush.bf16.msra.mxu0 0
  %51 = vmatpush.bf16.msra.mxu0 0
  %52 = vmatpush.bf16.msra.mxu0 0
  %53 = vmatpush.bf16.msra.mxu0 %v40
  %54 = vmatpush.bf16.msra.mxu0 %v39
  %55 = vmatmul.bf16.gmra.mxu0 %v45
  %v56 = vpop.f32.mrf.mxu0
  %v57 = vadd.f32 0.0, %v56
  %v58 = vpop.f32.mrf.mxu0
  %v59 = vadd.f32 0.0, %v58
  %60 = vdwg.mxu0
  %v61 = vadd.f32 %v22, %v57
  %v62 = vadd.f32 %v23, %v59
  %63 = vst.msk [vmem:[#allocation2] sm:$0xff] %vm43, %v61
  %64 = vst.msk [vmem:[#allocation2 + $0x8] sm:$0xff] %vm43, %v62
  // Predicated region
  $region18: #{masked_acoustic_model.29} parent=0 // pred_check
    %p65 = pneg %p15
  $region19: #{masked_acoustic_model.29} parent=0 // pred_check_branch
    %67 = sbr.rel (%p65) target = $region21
  $region20: #{masked_acoustic_model.29} parent=0 // pred_region
    %v68 = vld [vmem:[#allocation2] sm:$0xff]
    %v69 = vld [vmem:[#allocation2 + $0x8] sm:$0xff]
    %v70 = vld [vmem:[%s2] sm:$0x1]
    %v72 = vperm.slane %v70, 0
    %v74 = vadd.f32 %v68, %v72
    %v75 = vadd.f32 %v69, %v72
    %76 = vst.msk [vmem:[%s3] sm:$0xff] %vm43, %v74
    %77 = vst.msk [vmem:[%s3 + $0x8] sm:$0xff] %vm43, %v75
  $region21: #{masked_acoustic_model.29} parent=0 // pred_fallthru
    _
  // Predicated region
  $region22: #{masked_acoustic_model.29} parent=0 // pred_check
    _
  $region23: #{masked_acoustic_model.29} parent=0 // pred_check_branch
    %79 = sbr.rel (0) target = $region25
  $region24: #{masked_acoustic_model.29} parent=0 // pred_region
    _
  $region25: #{masked_acoustic_model.29} parent=0 // pred_fallthru
    _
  // Predicated region
  $region26: #{masked_acoustic_model.29} parent=0 // pred_check
    _
  $region27: #{masked_acoustic_model.29} parent=0 // pred_check_branch
    %81 = sbr.rel (0) target = $region29
  $region28: #{masked_acoustic_model.29} parent=0 // pred_region
    _
  $region29: #{masked_acoustic_model.29} parent=0 // pred_fallthru
    _

// kernel: masked_acoustic_model.22
$region0: #{masked_acoustic_model.22}
  #allocation0 [shape = 'u32[]', space=smem, size = 0x4, offset = 0x4, fixed_abs, tag = 'smem constant byte address 0x4 - core index']
  #allocation1 [shape = 'u32[72,128]{1,0:T(1,128)}', space=vmem, size = 0x9000, scoped, tag = 'internal scratch']
  #allocation2 [shape = 'f32[32,32]{1,0:T(8,128)}', space=vmem, size = 0x4000, scoped, tag = 'scratch operand']
  %s0 = inlined_call_operand.vmem [shape: f32[32,64], index: 0, kind: input, shape index: {}]
  %s1 = inlined_call_operand.vmem [shape: bf16[64,32], index: 1, kind: input, shape index: {}]
  %s2 = inlined_call_operand.vmem [shape: f32[1,32], index: 2, kind: input, shape index: {}]
  %s3 = inlined_call_operand.vmem [shape: f32[32,32], index: 3, kind: input, shape index: {}]
  %s4 = inlined_call_operand.vmem [shape: f32[1,32], index: 4, kind: input, shape index: {}]
  %s5 = inlined_call_operand.vmem [shape: f32[1,32], index: 5, kind: input, shape index: {}]
  %s6 = inlined_call_operand.vmem [shape: f32[32,32], index: 6, kind: output, shape index: {}]
  %s7 = sld [smem:[#allocation0]]
  $region42: #{masked_acoustic_model.22} parent=0
    _
  %s9 = ssub.s32 1, %s7
  %s10 = scalar_select 0, %s9, %s7
  // Predicated region
  $region2: #{masked_acoustic_model.22} parent=0 // pred_check
    _
  $region3: #{masked_acoustic_model.22} parent=0 // pred_check_branch
    %12 = sbr.rel (0) target = $region5
  $region4: #{masked_acoustic_model.22} parent=0 // pred_region
    _
  $region5: #{masked_acoustic_model.22} parent=0 // pred_fallthru
    _
  // Predicated region
  $region6: #{masked_acoustic_model.22} parent=0 // pred_check
    _
  $region7: #{masked_acoustic_model.22} parent=0 // pred_check_branch
    %14 = sbr.rel (0) target = $region9
  $region8: #{masked_acoustic_model.22} parent=0 // pred_region
    _
  $region9: #{masked_acoustic_model.22} parent=0 // pred_fallthru
    _
  // Predicated region
  $region10: #{masked_acoustic_model.22} parent=0 // pred_check
    _
  $region11: #{masked_acoustic_model.22} parent=0 // pred_check_branch
    %16 = sbr.rel (0) target = $region13
  $region12: #{masked_acoustic_model.22} parent=0 // pred_region
    _
  $region13: #{masked_acoustic_model.22} parent=0 // pred_fallthru
    _
  // Predicated region
  $region14: #{masked_acoustic_model.22} parent=0 // pred_check
    _
  $region15: #{masked_acoustic_model.22} parent=0 // pred_check_branch
    %18 = sbr.rel (0) target = $region17
  $region16: #{masked_acoustic_model.22} parent=0 // pred_region
    _
  $region17: #{masked_acoustic_model.22} parent=0 // pred_fallthru
    _
  // Predicated region
  $region18: #{masked_acoustic_model.22} parent=0 // pred_check
    _
  $region19: #{masked_acoustic_model.22} parent=0 // pred_check_branch
    %20 = sbr.rel (0) target = $region21
  $region20: #{masked_acoustic_model.22} parent=0 // pred_region
    _
  $region21: #{masked_acoustic_model.22} parent=0 // pred_fallthru
    _
  // Predicated region
  $region22: #{masked_acoustic_model.22} parent=0 // pred_check
    _
  $region23: #{masked_acoustic_model.22} parent=0 // pred_check_branch
    %22 = sbr.rel (0) target = $region25
  $region24: #{masked_acoustic_model.22} parent=0 // pred_region
    _
  $region25: #{masked_acoustic_model.22} parent=0 // pred_fallthru
    _
  %p24 = scmp.eq.s32.totalorder 0, 0
  // Predicated region
  $region26: #{masked_acoustic_model.22} parent=0 // pred_check
    %p25 = pneg %p24
  $region27: #{masked_acoustic_model.22} parent=0 // pred_check_branch
    %27 = sbr.rel (%p25) target = $region29
  $region28: #{masked_acoustic_model.22} parent=0 // pred_region
    %vm28 = vcmask 261120
    %29 = vst.msk [vmem:[#allocation2] sm:$0xff] %vm28, 0.0
    %30 = vst.msk [vmem:[#allocation2 + $0x8] sm:$0xff] %vm28, 0.0
    %31 = vst.msk [vmem:[#allocation2 + $0x10] sm:$0xff] %vm28, 0.0
    %32 = vst.msk [vmem:[#allocation2 + $0x18] sm:$0xff] %vm28, 0.0
  $region29: #{masked_acoustic_model.22} parent=0 // pred_fallthru
    _
  %v33 = vld [vmem:[#allocation2] sm:$0xff]
  %v34 = vld [vmem:[#allocation2 + $0x8] sm:$0xff]
  %v35 = vld [vmem:[#allocation2 + $0x10] sm:$0xff]
  %v36 = vld [vmem:[#allocation2 + $0x18] sm:$0xff]
  %v37 = vld [vmem:[%s0] sm:$0xff]
  %v38 = vld [vmem:[%s0 + $0x8] sm:$0xff]
  %v39 = vld [vmem:[%s0 + $0x10] sm:$0xff]
  %v40 = vld [vmem:[%s0 + $0x18] sm:$0xff]
  %v41 = vpack.c.bf16 %v38, %v37
  %v42 = vpack.c.bf16 %v40, %v39
  %v43 = vld [vmem:[%s1] sm:$0xf]
  %v44 = vld [vmem:[%s1 + $0x4] sm:$0xf]
  %v45 = vld [vmem:[%s1 + $0x8] sm:$0xf]
  %v46 = vld [vmem:[%s1 + $0xc] sm:$0xf]
  %v47 = vld [vmem:[%s1 + $0x10] sm:$0xf]
  %v48 = vld [vmem:[%s1 + $0x14] sm:$0xf]
  %v49 = vld [vmem:[%s1 + $0x18] sm:$0xf]
  %v50 = vld [vmem:[%s1 + $0x1c] sm:$0xf]
  %v59 = vunpack.c.l.b16 %v43
  %v60 = vunpack.c.l.b16 %v44
  %v61 = vunpack.c.l.b16 %v45
  %v62 = vunpack.c.l.b16 %v46
  %v63 = vunpack.c.l.b16 %v47
  %v64 = vunpack.c.l.b16 %v48
  %v65 = vunpack.c.l.b16 %v49
  %v66 = vunpack.c.l.b16 %v50
  %v67 = vpack.c.b16 %v60, %v59
  %v68 = vpack.c.b16 %v62, %v61
  %v69 = vpack.c.b16 %v64, %v63
  %v70 = vpack.c.b16 %v66, %v65
  %vm75 = vcmask 523264
  %v77 = vsel %vm75, %v41, 0
  %v80 = vsel %vm75, %v42, 0
  %82 = vmatpush.bf16.msra.mxu0 0
  %83 = vmatpush.bf16.msra.mxu0 0
  %84 = vmatpush.bf16.msra.mxu0 0
  %85 = vmatpush.bf16.msra.mxu0 0
  %86 = vmatpush.bf16.msra.mxu0 %v70
  %87 = vmatpush.bf16.msra.mxu0 %v69
  %88 = vmatpush.bf16.msra.mxu0 %v68
  %89 = vmatpush.bf16.msra.mxu0 %v67
  %90 = vmatmul.bf16.gmra.mxu0 %v77
  %v91 = vpop.f32.mrf.mxu0
  %v92 = vadd.f32 0.0, %v91
  %v93 = vpop.f32.mrf.mxu0
  %v94 = vadd.f32 0.0, %v93
  %95 = vmatmul.bf16.gmra.mxu0 %v80
  %v96 = vpop.f32.mrf.mxu0
  %v97 = vadd.f32 0.0, %v96
  %v98 = vpop.f32.mrf.mxu0
  %v99 = vadd.f32 0.0, %v98
  %100 = vdwg.mxu0
  %v101 = vadd.f32 %v33, %v92
  %v102 = vadd.f32 %v34, %v94
  %v103 = vadd.f32 %v35, %v97
  %v104 = vadd.f32 %v36, %v99
  %vm105 = vcmask 261120
  %106 = vst.msk [vmem:[#allocation2] sm:$0xff] %vm105, %v101
  %107 = vst.msk [vmem:[#allocation2 + $0x8] sm:$0xff] %vm105, %v102
  %108 = vst.msk [vmem:[#allocation2 + $0x10] sm:$0xff] %vm105, %v103
  %109 = vst.msk [vmem:[#allocation2 + $0x18] sm:$0xff] %vm105, %v104
  // Predicated region
  $region30: #{masked_acoustic_model.22} parent=0 // pred_check
    %p110 = pneg %p24
  $region31: #{masked_acoustic_model.22} parent=0 // pred_check_branch
    %112 = sbr.rel (%p110) target = $region33
  $region32: #{masked_acoustic_model.22} parent=0 // pred_region
    %v113 = vld [vmem:[#allocation2] sm:$0xff]
    %v114 = vld [vmem:[#allocation2 + $0x8] sm:$0xff]
    %v115 = vld [vmem:[#allocation2 + $0x10] sm:$0xff]
    %v116 = vld [vmem:[#allocation2 + $0x18] sm:$0xff]
    %v117 = vld [vmem:[%s2] sm:$0x1]
    %v119 = vperm.slane %v117, 0
    %v121 = vadd.f32 %v113, %v119
    %v122 = vadd.f32 %v114, %v119
    %v123 = vadd.f32 %v115, %v119
    %v124 = vadd.f32 %v116, %v119
    %v125 = vld [vmem:[%s3] sm:$0xff]
    %v126 = vld [vmem:[%s3 + $0x8] sm:$0xff]
    %v127 = vld [vmem:[%s3 + $0x10] sm:$0xff]
    %v128 = vld [vmem:[%s3 + $0x18] sm:$0xff]
    %v129 = vadd.f32 %v121, %v125
    %v130 = vadd.f32 %v122, %v126
    %v131 = vadd.f32 %v123, %v127
    %v132 = vadd.f32 %v124, %v128
    %v133 = vsel %vm105, %v129, 0.0
    %134 = vadd.xlane.f32.xlu0 %v133
    %v135 = vpop.xlane.xlu0 %134
    %v136 = vsel %vm105, %v130, 0.0
    %137 = vadd.xlane.f32.xlu0 %v136
    %v138 = vpop.xlane.xlu0 %137
    %v139 = vsel %vm105, %v131, 0.0
    %140 = vadd.xlane.f32.xlu0 %v139
    %v141 = vpop.xlane.xlu0 %140
    %v142 = vsel %vm105, %v132, 0.0
    %143 = vadd.xlane.f32.xlu0 %v142
    %v144 = vpop.xlane.xlu0 %143
    %v145 = vrcp.pop 32.0
    %v146 = vmul.f32 32.0, %v145
    %v147 = vsub.f32 1.0, %v146
    %v148 = vmul.f32 %v145, %v147
    %v149 = vadd.f32 %v145, %v148
    %vm150 = vweird.f32 %v145
    %v151 = vsel %vm150, %v145, %v149
    %v152 = vmul.f32 %v135, %v151
    %v153 = vmul.f32 %v138, %v151
    %v154 = vmul.f32 %v141, %v151
    %v155 = vmul.f32 %v144, %v151
    %v156 = vsub.f32 %v129, %v152
    %v157 = vsub.f32 %v130, %v153
    %v158 = vsub.f32 %v131, %v154
    %v159 = vsub.f32 %v132, %v155
    %v160 = vmul.f32 %v156, %v156
    %v161 = vmul.f32 %v157, %v157
    %v162 = vmul.f32 %v158, %v158
    %v163 = vmul.f32 %v159, %v159
    %v164 = vsel %vm105, %v160, 0.0
    %165 = vadd.xlane.f32.xlu0 %v164
    %v166 = vpop.xlane.xlu0 %165
    %v167 = vsel %vm105, %v161, 0.0
    %168 = vadd.xlane.f32.xlu0 %v167
    %v169 = vpop.xlane.xlu0 %168
    %v170 = vsel %vm105, %v162, 0.0
    %171 = vadd.xlane.f32.xlu0 %v170
    %v172 = vpop.xlane.xlu0 %171
    %v173 = vsel %vm105, %v163, 0.0
    %174 = vadd.xlane.f32.xlu0 %v173
    %v175 = vpop.xlane.xlu0 %174
    %v176 = vmul.f32 %v166, %v151
    %v177 = vmul.f32 %v169, %v151
    %v178 = vmul.f32 %v172, %v151
    %v179 = vmul.f32 %v175, %v151
    %v180 = vadd.f32 %v176, 1e-12
    %v181 = vadd.f32 %v177, 1e-12
    %v182 = vadd.f32 %v178, 1e-12
    %v183 = vadd.f32 %v179, 1e-12
    %v184 = vrsqrt.pop %v180
    %v185 = vmul.f32 %v184, %v180
    %v186 = vmul.f32 %v185, %v184
    %v187 = vmul.f32 0.5, %v186
    %v188 = vsub.f32 1.5, %v187
    %v189 = vmul.f32 %v184, %v188
    %vm190 = vweird.f32 %v180
    %vm191 = vweird.f32 %v184
    %vm192 = vmor %vm190, %vm191
    %v193 = vsel %vm192, %v184, %v189
    %v194 = vrsqrt.pop %v181
    %v195 = vmul.f32 %v194, %v181
    %v196 = vmul.f32 %v195, %v194
    %v197 = vmul.f32 0.5, %v196
    %v198 = vsub.f32 1.5, %v197
    %v199 = vmul.f32 %v194, %v198
    %vm200 = vweird.f32 %v181
    %vm201 = vweird.f32 %v194
    %vm202 = vmor %vm200, %vm201
    %v203 = vsel %vm202, %v194, %v199
    %v204 = vrsqrt.pop %v182
    %v205 = vmul.f32 %v204, %v182
    %v206 = vmul.f32 %v205, %v204
    %v207 = vmul.f32 0.5, %v206
    %v208 = vsub.f32 1.5, %v207
    %v209 = vmul.f32 %v204, %v208
    %vm210 = vweird.f32 %v182
    %vm211 = vweird.f32 %v204
    %vm212 = vmor %vm210, %vm211
    %v213 = vsel %vm212, %v204, %v209
    %v214 = vrsqrt.pop %v183
    %v215 = vmul.f32 %v214, %v183
    %v216 = vmul.f32 %v215, %v214
    %v217 = vmul.f32 0.5, %v216
    %v218 = vsub.f32 1.5, %v217
    %v219 = vmul.f32 %v214, %v218
    %vm220 = vweird.f32 %v183
    %vm221 = vweird.f32 %v214
    %vm222 = vmor %vm220, %vm221
    %v223 = vsel %vm222, %v214, %v219
    %v224 = vmul.f32 %v156, %v193
    %v225 = vmul.f32 %v157, %v203
    %v226 = vmul.f32 %v158, %v213
    %v227 = vmul.f32 %v159, %v223
    %v228 = vld [vmem:[%s4] sm:$0x1]
    %v230 = vperm.slane %v228, 0
    %v232 = vmul.f32 %v224, %v230
    %v233 = vmul.f32 %v225, %v230
    %v234 = vmul.f32 %v226, %v230
    %v235 = vmul.f32 %v227, %v230
    %v236 = vld [vmem:[%s5] sm:$0x1]
    %v238 = vperm.slane %v236, 0
    %v240 = vadd.f32 %v232, %v238
    %v241 = vadd.f32 %v233, %v238
    %v242 = vadd.f32 %v234, %v238
    %v243 = vadd.f32 %v235, %v238
    %244 = vst.msk [vmem:[%s6] sm:$0xff] %vm105, %v240
    %245 = vst.msk [vmem:[%s6 + $0x8] sm:$0xff] %vm105, %v241
    %246 = vst.msk [vmem:[%s6 + $0x10] sm:$0xff] %vm105, %v242
    %247 = vst.msk [vmem:[%s6 + $0x18] sm:$0xff] %vm105, %v243
  $region33: #{masked_acoustic_model.22} parent=0 // pred_fallthru
    _
  // Predicated region
  $region34: #{masked_acoustic_model.22} parent=0 // pred_check
    _
  $region35: #{masked_acoustic_model.22} parent=0 // pred_check_branch
    %249 = sbr.rel (0) target = $region37
  $region36: #{masked_acoustic_model.22} parent=0 // pred_region
    _
  $region37: #{masked_acoustic_model.22} parent=0 // pred_fallthru
    _
  // Predicated region
  $region38: #{masked_acoustic_model.22} parent=0 // pred_check
    _
  $region39: #{masked_acoustic_model.22} parent=0 // pred_check_branch
    %251 = sbr.rel (0) target = $region41
  $region40: #{masked_acoustic_model.22} parent=0 // pred_region
    _
  $region41: #{masked_acoustic_model.22} parent=0 // pred_fallthru
    _

// kernel: masked_acoustic_model.28
$region0: #{masked_acoustic_model.28}
  #allocation0 [shape = 'u32[]', space=smem, size = 0x4, offset = 0x4, fixed_abs, tag = 'smem constant byte address 0x4 - core index']
  #allocation1 [shape = 'u32[72,128]{1,0:T(1,128)}', space=vmem, size = 0x9000, scoped, tag = 'internal scratch']
  #allocation2 [shape = 'f32[16,32]{1,0:T(8,128)}', space=vmem, size = 0x2000, scoped, tag = 'scratch operand']
  %s0 = inlined_call_operand.vmem [shape: f32[16,32], index: 0, kind: input, shape index: {}]
  %s1 = inlined_call_operand.vmem [shape: bf16[32,32], index: 1, kind: input, shape index: {}]
  %s2 = inlined_call_operand.vmem [shape: f32[1,32], index: 2, kind: input, shape index: {}]
  %s3 = inlined_call_operand.vmem [shape: f32[1,32], index: 3, kind: input, shape index: {}]
  %s4 = inlined_call_operand.vmem [shape: f32[1,32], index: 4, kind: input, shape index: {}]
  %s5 = inlined_call_operand.vmem [shape: f32[16,32], index: 5, kind: output, shape index: {}]
  %s6 = sld [smem:[#allocation0]]
  $region38: #{masked_acoustic_model.28} parent=0
    _
  %s8 = ssub.s32 1, %s6
  %s9 = scalar_select 0, %s8, %s6
  // Predicated region
  $region2: #{masked_acoustic_model.28} parent=0 // pred_check
    _
  $region3: #{masked_acoustic_model.28} parent=0 // pred_check_branch
    %11 = sbr.rel (0) target = $region5
  $region4: #{masked_acoustic_model.28} parent=0 // pred_region
    _
  $region5: #{masked_acoustic_model.28} parent=0 // pred_fallthru
    _
  // Predicated region
  $region6: #{masked_acoustic_model.28} parent=0 // pred_check
    _
  $region7: #{masked_acoustic_model.28} parent=0 // pred_check_branch
    %13 = sbr.rel (0) target = $region9
  $region8: #{masked_acoustic_model.28} parent=0 // pred_region
    _
  $region9: #{masked_acoustic_model.28} parent=0 // pred_fallthru
    _
  // Predicated region
  $region10: #{masked_acoustic_model.28} parent=0 // pred_check
    _
  $region11: #{masked_acoustic_model.28} parent=0 // pred_check_branch
    %15 = sbr.rel (0) target = $region13
  $region12: #{masked_acoustic_model.28} parent=0 // pred_region
    _
  $region13: #{masked_acoustic_model.28} parent=0 // pred_fallthru
    _
  // Predicated region
  $region14: #{masked_acoustic_model.28} parent=0 // pred_check
    _
  $region15: #{masked_acoustic_model.28} parent=0 // pred_check_branch
    %17 = sbr.rel (0) target = $region17
  $region16: #{masked_acoustic_model.28} parent=0 // pred_region
    _
  $region17: #{masked_acoustic_model.28} parent=0 // pred_fallthru
    _
  // Predicated region
  $region18: #{masked_acoustic_model.28} parent=0 // pred_check
    _
  $region19: #{masked_acoustic_model.28} parent=0 // pred_check_branch
    %19 = sbr.rel (0) target = $region21
  $region20: #{masked_acoustic_model.28} parent=0 // pred_region
    _
  $region21: #{masked_acoustic_model.28} parent=0 // pred_fallthru
    _
  %p21 = scmp.eq.s32.totalorder 0, 0
  // Predicated region
  $region22: #{masked_acoustic_model.28} parent=0 // pred_check
    %p22 = pneg %p21
  $region23: #{masked_acoustic_model.28} parent=0 // pred_check_branch
    %24 = sbr.rel (%p22) target = $region25
  $region24: #{masked_acoustic_model.28} parent=0 // pred_region
    %vm25 = vcmask 261120
    %26 = vst.msk [vmem:[#allocation2] sm:$0xff] %vm25, 0.0
    %27 = vst.msk [vmem:[#allocation2 + $0x8] sm:$0xff] %vm25, 0.0
  $region25: #{masked_acoustic_model.28} parent=0 // pred_fallthru
    _
  %v28 = vld [vmem:[#allocation2] sm:$0xff]
  %v29 = vld [vmem:[#allocation2 + $0x8] sm:$0xff]
  %v30 = vld [vmem:[%s0] sm:$0xff]
  %v31 = vld [vmem:[%s0 + $0x8] sm:$0xff]
  %v32 = vpack.c.bf16 %v31, %v30
  %v33 = vld [vmem:[%s1] sm:$0xf]
  %v34 = vld [vmem:[%s1 + $0x4] sm:$0xf]
  %v35 = vld [vmem:[%s1 + $0x8] sm:$0xf]
  %v36 = vld [vmem:[%s1 + $0xc] sm:$0xf]
  %v41 = vunpack.c.l.b16 %v33
  %v42 = vunpack.c.l.b16 %v34
  %v43 = vunpack.c.l.b16 %v35
  %v44 = vunpack.c.l.b16 %v36
  %v45 = vpack.c.b16 %v42, %v41
  %v46 = vpack.c.b16 %v44, %v43
  %vm49 = vcmask 261120
  %v51 = vsel %vm49, %v32, 0
  %53 = vmatpush.bf16.msra.mxu0 0
  %54 = vmatpush.bf16.msra.mxu0 0
  %55 = vmatpush.bf16.msra.mxu0 0
  %56 = vmatpush.bf16.msra.mxu0 0
  %57 = vmatpush.bf16.msra.mxu0 0
  %58 = vmatpush.bf16.msra.mxu0 0
  %59 = vmatpush.bf16.msra.mxu0 %v46
  %60 = vmatpush.bf16.msra.mxu0 %v45
  %61 = vmatmul.bf16.gmra.mxu0 %v51
  %v62 = vpop.f32.mrf.mxu0
  %v63 = vadd.f32 0.0, %v62
  %v64 = vpop.f32.mrf.mxu0
  %v65 = vadd.f32 0.0, %v64
  %66 = vdwg.mxu0
  %v67 = vadd.f32 %v28, %v63
  %v68 = vadd.f32 %v29, %v65
  %69 = vst.msk [vmem:[#allocation2] sm:$0xff] %vm49, %v67
  %70 = vst.msk [vmem:[#allocation2 + $0x8] sm:$0xff] %vm49, %v68
  // Predicated region
  $region26: #{masked_acoustic_model.28} parent=0 // pred_check
    %p71 = pneg %p21
  $region27: #{masked_acoustic_model.28} parent=0 // pred_check_branch
    %73 = sbr.rel (%p71) target = $region29
  $region28: #{masked_acoustic_model.28} parent=0 // pred_region
    %v74 = vld [vmem:[#allocation2] sm:$0xff]
    %v75 = vld [vmem:[#allocation2 + $0x8] sm:$0xff]
    %v76 = vld [vmem:[%s2] sm:$0x1]
    %v78 = vperm.slane %v76, 0
    %v80 = vadd.f32 %v74, %v78
    %v81 = vadd.f32 %v75, %v78
    %v82 = vmul.f32 %v80, 0.5
    %v83 = vmul.f32 %v81, 0.5
    %v84 = vmul.f32 %v80, 0.044715
    %v85 = vmul.f32 %v81, 0.044715
    %v86 = vmul.f32 %v84, %v80
    %v87 = vmul.f32 %v85, %v81
    %v88 = vmul.f32 %v86, %v80
    %v89 = vmul.f32 %v87, %v81
    %v90 = vadd.f32 %v80, %v88
    %v91 = vadd.f32 %v81, %v89
    %v92 = vmul.f32 %v90, 0.7978846
    %v93 = vmul.f32 %v91, 0.7978846
    %v94 = vtanh.pop %v92
    %v95 = vtanh.pop %v93
    %v96 = vadd.f32 %v94, 1.0
    %v97 = vadd.f32 %v95, 1.0
    %v98 = vmul.f32 %v82, %v96
    %v99 = vmul.f32 %v83, %v97
    %v100 = vsel %vm49, %v98, 0.0
    %101 = vadd.xlane.f32.xlu0 %v100
    %v102 = vpop.xlane.xlu0 %101
    %v103 = vsel %vm49, %v99, 0.0
    %104 = vadd.xlane.f32.xlu0 %v103
    %v105 = vpop.xlane.xlu0 %104
    %v106 = vrcp.pop 32.0
    %v107 = vmul.f32 32.0, %v106
    %v108 = vsub.f32 1.0, %v107
    %v109 = vmul.f32 %v106, %v108
    %v110 = vadd.f32 %v106, %v109
    %vm111 = vweird.f32 %v106
    %v112 = vsel %vm111, %v106, %v110
    %v113 = vmul.f32 %v102, %v112
    %v114 = vmul.f32 %v105, %v112
    %v115 = vsub.f32 %v98, %v113
    %v116 = vsub.f32 %v99, %v114
    %v117 = vmul.f32 %v115, %v115
    %v118 = vmul.f32 %v116, %v116
    %v119 = vsel %vm49, %v117, 0.0
    %120 = vadd.xlane.f32.xlu0 %v119
    %v121 = vpop.xlane.xlu0 %120
    %v122 = vsel %vm49, %v118, 0.0
    %123 = vadd.xlane.f32.xlu0 %v122
    %v124 = vpop.xlane.xlu0 %123
    %v125 = vmul.f32 %v121, %v112
    %v126 = vmul.f32 %v124, %v112
    %v127 = vadd.f32 %v125, 1e-12
    %v128 = vadd.f32 %v126, 1e-12
    %v129 = vrsqrt.pop %v127
    %v130 = vmul.f32 %v129, %v127
    %v131 = vmul.f32 %v130, %v129
    %v132 = vmul.f32 0.5, %v131
    %v133 = vsub.f32 1.5, %v132
    %v134 = vmul.f32 %v129, %v133
    %vm135 = vweird.f32 %v127
    %vm136 = vweird.f32 %v129
    %vm137 = vmor %vm135, %vm136
    %v138 = vsel %vm137, %v129, %v134
    %v139 = vrsqrt.pop %v128
    %v140 = vmul.f32 %v139, %v128
    %v141 = vmul.f32 %v140, %v139
    %v142 = vmul.f32 0.5, %v141
    %v143 = vsub.f32 1.5, %v142
    %v144 = vmul.f32 %v139, %v143
    %vm145 = vweird.f32 %v128
    %vm146 = vweird.f32 %v139
    %vm147 = vmor %vm145, %vm146
    %v148 = vsel %vm147, %v139, %v144
    %v149 = vmul.f32 %v115, %v138
    %v150 = vmul.f32 %v116, %v148
    %v151 = vld [vmem:[%s3] sm:$0x1]
    %v153 = vperm.slane %v151, 0
    %v155 = vmul.f32 %v149, %v153
    %v156 = vmul.f32 %v150, %v153
    %v157 = vld [vmem:[%s4] sm:$0x1]
    %v159 = vperm.slane %v157, 0
    %v161 = vadd.f32 %v155, %v159
    %v162 = vadd.f32 %v156, %v159
    %163 = vst.msk [vmem:[%s5] sm:$0xff] %vm49, %v161
    %164 = vst.msk [vmem:[%s5 + $0x8] sm:$0xff] %vm49, %v162
  $region29: #{masked_acoustic_model.28} parent=0 // pred_fallthru
    _
  // Predicated region
  $region30: #{masked_acoustic_model.28} parent=0 // pred_check
    _
  $region31: #{masked_acoustic_model.28} parent=0 // pred_check_branch
    %166 = sbr.rel (0) target = $region33
  $region32: #{masked_acoustic_model.28} parent=0 // pred_region
    _
  $region33: #{masked_acoustic_model.28} parent=0 // pred_fallthru
    _
  // Predicated region
  $region34: #{masked_acoustic_model.28} parent=0 // pred_check
    _
  $region35: #{masked_acoustic_model.28} parent=0 // pred_check_branch
    %168 = sbr.rel (0) target = $region37
  $region36: #{masked_acoustic_model.28} parent=0 // pred_region
    _
  $region37: #{masked_acoustic_model.28} parent=0 // pred_fallthru
    _

// kernel: masked_acoustic_model.32
$region0: #{masked_acoustic_model.32}
  #allocation0 [shape = 'u32[]', space=smem, size = 0x4, offset = 0x4, fixed_abs, tag = 'smem constant byte address 0x4 - core index']
  #allocation1 [shape = 'u32[72,128]{1,0:T(1,128)}', space=vmem, size = 0x9000, scoped, tag = 'internal scratch']
  %s0 = inlined_call_operand.vmem [shape: f32[16,32], index: 0, kind: input, shape index: {}]
  %s1 = inlined_call_operand.vmem [shape: f32[16,32], index: 1, kind: input, shape index: {}]
  %s2 = inlined_call_operand.vmem [shape: f32[16,32], index: 2, kind: input, shape index: {}]
  %s3 = inlined_call_operand.vmem [shape: f32[2], index: 3, kind: output, shape index: {}]
  %s4 = sld [smem:[#allocation0]]
  $region26: #{masked_acoustic_model.32} parent=0
    _
  %s6 = ssub.s32 1, %s4
  %s7 = scalar_select 0, %s6, %s4
  $region1: #{masked_acoustic_model.32} parent=0
    #allocation2 [shape = 'u8[512]{0}', space=smem, size = 0x200, scoped, tag = 'output window, operand 0, single buffered']
    #allocation3 [shape = 's32[1]{0}', space=sflag, size = 0x4, scoped, tag = 'scoped memory for masked_acoustic_model.32']
    %8 = vsyncpa [#allocation3], 0
    // Predicated region
    $region2: #{masked_acoustic_model.32} parent=1 // pred_check
      _
    $region3: #{masked_acoustic_model.32} parent=1 // pred_check_branch
      %10 = sbr.rel (0) target = $region5
    $region4: #{masked_acoustic_model.32} parent=1 // pred_region
      _
    $region5: #{masked_acoustic_model.32} parent=1 // pred_fallthru
      _
    // Predicated region
    $region6: #{masked_acoustic_model.32} parent=1 // pred_check
      _
    $region7: #{masked_acoustic_model.32} parent=1 // pred_check_branch
      %12 = sbr.rel (0) target = $region9
    $region8: #{masked_acoustic_model.32} parent=1 // pred_region
      _
    $region9: #{masked_acoustic_model.32} parent=1 // pred_fallthru
      _
    // Predicated region
    $region10: #{masked_acoustic_model.32} parent=1 // pred_check
      _
    $region11: #{masked_acoustic_model.32} parent=1 // pred_check_branch
      %14 = sbr.rel (0) target = $region13
    $region12: #{masked_acoustic_model.32} parent=1 // pred_region
      _
    $region13: #{masked_acoustic_model.32} parent=1 // pred_fallthru
      _
    %p15 = scmp.eq.s32.totalorder 0, 0
    // Predicated region
    $region14: #{masked_acoustic_model.32} parent=1 // pred_check
      %p16 = pneg %p15
    $region15: #{masked_acoustic_model.32} parent=1 // pred_check_branch
      %18 = sbr.rel (%p16) target = $region17
    $region16: #{masked_acoustic_model.32} parent=1 // pred_region
      %s19 = scalar_lea.smem [#allocation2], 0
      %20 = sst [smem:[%s19]] 0.0
      %s21 = scalar_lea.smem [#allocation2], 1
      %22 = sst [smem:[%s21]] 0.0
    $region17: #{masked_acoustic_model.32} parent=1 // pred_fallthru
      _
    %v23 = vld [vmem:[%s2] sm:$0xff]
    %v24 = vld [vmem:[%s2 + $0x8] sm:$0xff]
    %s25 = sld [smem:[#allocation2]]
    %v26 = vld [vmem:[%s0] sm:$0xff]
    %v27 = vld [vmem:[%s0 + $0x8] sm:$0xff]
    %v28 = vld [vmem:[%s1] sm:$0xff]
    %v29 = vld [vmem:[%s1 + $0x8] sm:$0xff]
    %v30 = vsub.f32 %v26, %v28
    %v31 = vsub.f32 %v27, %v29
    %v32 = vand.u32 2147483647, %v30
    %v33 = vand.u32 2147483647, %v31
    %v34 = vmul.f32 %v32, %v23
    %v35 = vmul.f32 %v33, %v24
    %vm36 = vcmask 261120
    %v37 = vsel %vm36, %v34, 0.0
    %v38 = vsel %vm36, %v35, 0.0
    %v39 = vadd.f32 %v37, %v38
    %40 = vadd.xlane.f32.xlu0 %v39
    %v41 = vpop.xlane.xlu0 %40
    %v42 = vrot.slane %v41, 4
    %v43 = vadd.f32 %v41, %v42
    %v44 = vrot.slane %v43, 2
    %v45 = vadd.f32 %v43, %v44
    %v46 = vrot.slane %v45, 1
    %v47 = vadd.f32 %v45, %v46
    %s48 = vtos %v47
    %s49 = sadd.f32 %s25, %s48
    %s50 = scalar_lea.smem [#allocation2], 0
    %51 = sst [smem:[%s50]] %s49
    %s52 = sld [smem:[#allocation2 + $0x1]]
    %v53 = vsel %vm36, %v23, 0.0
    %v54 = vsel %vm36, %v24, 0.0
    %v55 = vadd.f32 %v53, %v54
    %56 = vadd.xlane.f32.xlu0 %v55
    %v57 = vpop.xlane.xlu0 %56
    %v58 = vrot.slane %v57, 4
    %v59 = vadd.f32 %v57, %v58
    %v60 = vrot.slane %v59, 2
    %v61 = vadd.f32 %v59, %v60
    %v62 = vrot.slane %v61, 1
    %v63 = vadd.f32 %v61, %v62
    %s64 = vtos %v63
    %s65 = sadd.f32 %s52, %s64
    %s66 = scalar_lea.smem [#allocation2], 1
    %67 = sst [smem:[%s66]] %s65
    // Predicated region
    $region18: #{masked_acoustic_model.32} parent=1 // pred_check
      _
    $region19: #{masked_acoustic_model.32} parent=1 // pred_check_branch
      %69 = sbr.rel (0) target = $region21
    $region20: #{masked_acoustic_model.32} parent=1 // pred_region
      %71 = vsyncadd [#allocation3], 0
      %s73 = sshll.u32 %s3, 4
      %s74 = int_to_ptr.vmem [resolvable:$true] %s73
      %76 = dma.smem_to_vmem [#allocation2], 16, %s74, [#allocation3]
    $region21: #{masked_acoustic_model.32} parent=1 // pred_fallthru
      _
    // Predicated region
    $region22: #{masked_acoustic_model.32} parent=1 // pred_check
      _
    $region23: #{masked_acoustic_model.32} parent=1 // pred_check_branch
      %78 = sbr.rel (0) target = $region25
    $region24: #{masked_acoustic_model.32} parent=1 // pred_region
      %80 = dma.done [#allocation3], 16
    $region25: #{masked_acoustic_model.32} parent=1 // pred_fallthru
      _
    %81 = sfence
    %82 = vsyncpa [#allocation3], 1

</llo_original>
